<compile_context>
chip_gen: v5e
topology: v5e:2x2
jax: 0.10.0
libtpu: 0.0.40
codegen_flags: <defaults>
</compile_context>

<pallas_src>
import jax
import jax.numpy as jnp
from jax.experimental import pallas as pl
from jax.experimental.pallas import tpu as pltpu

# ---------------------------------------------------------------------------
# Hyper-parameters (match SNSRGANLoss.__init__ defaults)
# ---------------------------------------------------------------------------
ALPHA = 1.0
BETA = 0.001
LAMBDA = 1e-06
ETA = 0.1
N_POW = 10
PATCH_SIZE = 16  # c.PATCH_SIZE stand-in == spatial size of sr / hr

# 3x3 conv tap offsets, row-major (oy, ox); tap index t = (oy+1)*3 + (ox+1)
OFFSETS = tuple((oy, ox) for oy in (-1, 0, 1) for ox in (-1, 0, 1))
CENTER_TAP = 4
MASK_H_ROW = 7   # tap (+1, 0): valid iff y+1 <= H-1  -> TV height mask
MASK_V_ROW = 5   # tap (0, +1): valid iff x+1 <= W-1  -> TV width mask
DMAP_ROW = 9     # distance_transform(mask)**n, tiled per image (sr half only)


# ---------------------------------------------------------------------------
# Fused kernel: tap-stacked conv stack (sr|hr batched) + single loss reduction
# ---------------------------------------------------------------------------
def _make_fused_kernel(N, C, H, W, CP, C1, C2):
    HW = H * W
    NHW = N * HW            # lanes of the sr (== hr) half
    LANES = 2 * NHW         # sr | hr stacked along the lane axis
    KDIM = 10 * CP          # 9 taps * CP channels + CP bias/pad rows

    inv_pix = 1.0 / float(C * NHW)    # pixel / transform MSE denominator
    inv_feat = 1.0 / float(C2 * NHW)  # perceptual MSE denominator

    def kernel(x_ref, aux_ref, params_ref, adv_ref, out_ref, stack_ref):
        x = x_ref[...]                                        # (CP, LANES) f32

        # Constant tail of the tap stack, shared by both layers: row 9*CP is
        # all-ones (bias column of the packed weights), the remaining CP-1
        # rows are zeros (padding so the block stays 8-sublane aligned).
        row_id = jax.lax.broadcasted_iota(jnp.int32, (CP, LANES), 0)
        stack_ref[pl.ds(9 * CP, CP), :] = (row_id == 0).astype(jnp.float32)

        def conv3x3_relu(inp, layer):
            # Build the tap-stacked operand in VMEM: tap t occupies the
            # aligned sublane block [t*CP, (t+1)*CP).  Boundary masks give
            # zero-padding semantics for lanes whose tap falls off the image
            # (or would wrap into the neighbouring image).
            for t, (oy, ox) in enumerate(OFFSETS):
                off = oy * W + ox
                if off == 0:
                    shifted = inp
                else:
                    # shifted[:, p] == inp[:, p + off]
                    shifted = pltpu.roll(inp, (-off) % LANES, axis=1)
                if t != CENTER_TAP:
                    shifted = shifted * aux_ref[pl.ds(t, 1), :]
                stack_ref[pl.ds(t * CP, CP), :] = shifted
            # ONE matmul per layer: (CO, KDIM) @ (KDIM, LANES); bias folded in
            # via the ones row, so no separate (CO, 1) broadcast add.
            w = params_ref[layer]                             # (CO, KDIM)
            y = jnp.dot(w, stack_ref[...], preferred_element_type=jnp.float32)
            return jnp.maximum(y, 0.0)

        # Shared-weight feature stack on the stacked sr|hr batch (runs once).
        f1 = conv3x3_relu(x, 0)                               # (C1, LANES)
        f2 = conv3x3_relu(f1, 1)                              # (C2, LANES)

        sr, hr = x[:, :NHW], x[:, NHW:]
        srf, hrf = f2[:, :NHW], f2[:, NHW:]

        # Static masks / weight map come from the aux slab (no in-kernel iota).
        mask_h = aux_ref[pl.ds(MASK_H_ROW, 1), pl.ds(0, NHW)]   # (1, NHW)
        mask_v = aux_ref[pl.ds(MASK_V_ROW, 1), pl.ds(0, NHW)]   # (1, NHW)
        dmap = aux_ref[pl.ds(DMAP_ROW, 1), pl.ds(0, NHW)]       # (1, NHW)

        dpix = hr - sr                                          # (CP, NHW)
        dh = (pltpu.roll(sr, NHW - W, axis=1) - sr) * mask_h    # sr[y+1,x]-sr[y,x]
        dv = (pltpu.roll(sr, NHW - 1, axis=1) - sr) * mask_v    # sr[y,x+1]-sr[y,x]
        dtr = dpix * dmap                                       # transform diff
        dft = srf - hrf                                         # (C2, NHW)

        # Fold every loss term into one elementwise accumulator -> one sum.
        # (padded channel rows of x are zero, so they contribute nothing.)
        acc = ((ALPHA * inv_pix) * (dpix * dpix)
               + LAMBDA * (dh * dh + dv * dv)
               + (0.5 * ETA * inv_pix) * (dtr * dtr))
        if dft.shape == acc.shape:                              # C2 == CP: fold in
            acc = acc + (BETA * inv_feat) * (dft * dft)
            total = adv_ref[0] + jnp.sum(acc)
        else:                                                   # fallback: 2 reduces
            total = (adv_ref[0] + jnp.sum(acc)
                     + (BETA * inv_feat) * jnp.sum(dft * dft))
        out_ref[0] = total

    return kernel


# ---------------------------------------------------------------------------
# Wrapper-side glue (all static / tiny; constant-folded or fused by XLA)
# ---------------------------------------------------------------------------
def _distance_transform(mask):
    """Euclidean distance to the nearest zero pixel (matches torch.cdist + min)."""
    h, w = mask.shape
    m = (mask > 0).astype(jnp.float32)
    ys, xs = jnp.meshgrid(jnp.arange(h), jnp.arange(w), indexing="ij")
    coords = jnp.stack([ys.ravel(), xs.ravel()], axis=1).astype(jnp.float32)
    d2 = jnp.sum((coords[:, None, :] - coords[None, :, :]) ** 2, axis=-1)
    dist = jnp.sqrt(d2)
    zero = m.ravel() == 0
    dist = jnp.where(zero[None, :], dist, jnp.inf)   # distances to 0-pixels only
    mind = jnp.min(dist, axis=1)
    # Guard: an all-ones random mask has no zero pixel (torch would error /
    # inf^n would poison the loss); fall back to distance 0 in that case.
    mind = jnp.where(jnp.isfinite(mind), mind, 0.0)
    return mind.reshape(h, w)


def _build_aux(N, H, W, d_con_n):
    """(10, 2*N*H*W) slab: 9 zero-padding tap masks + tiled distance^n row."""
    HW = H * W
    NHW = N * HW
    LANES = 2 * NHW
    lane = jnp.arange(LANES, dtype=jnp.int32)
    pix = lane % HW
    yy = pix // W
    xx = pix % W
    rows = []
    for (oy, ox) in OFFSETS:
        ok = ((yy + oy >= 0) & (yy + oy <= H - 1)
              & (xx + ox >= 0) & (xx + ox <= W - 1))
        rows.append(ok.astype(jnp.float32))
    dmap = jnp.concatenate(
        [jnp.tile(d_con_n.reshape(1, HW), (N, 1)).reshape(NHW),
         jnp.zeros((NHW,), jnp.float32)])
    rows.append(dmap)
    return jnp.stack(rows, axis=0)


def _pack_layer(w, b, cp, kdim):
    """(CO, Ci, 3, 3) + (CO,) -> (CO, kdim) tap-stacked weights, bias in col 9*cp."""
    co, ci = w.shape[0], w.shape[1]
    wt = jnp.transpose(w, (0, 2, 3, 1))                       # (co, 3, 3, ci)
    wt = jnp.pad(wt, ((0, 0), (0, 0), (0, 0), (0, cp - ci)))  # pad ci -> cp
    wt = wt.reshape(co, 9 * cp)
    packed = jnp.zeros((co, kdim), jnp.float32)
    packed = packed.at[:, :9 * cp].set(wt)
    packed = packed.at[:, 9 * cp].set(b.astype(jnp.float32))  # ones-row column
    return packed


def snsrgan_loss(sr, hr, d_fake, vgg_params, mask_key):
    N, C, H, W = sr.shape
    w1, b1, w2, b2 = vgg_params
    C1, C2 = w1.shape[0], w2.shape[0]
    CP = max(C, C1)                 # padded channel count -> full sublane blocks
    assert C1 == CP and C2 == C1, "stand-in VGG assumes C1 == C2 == padded Cin"
    HW = H * W
    NHW = N * HW
    LANES = 2 * NHW
    KDIM = 10 * CP

    # Lane-dense slab: channel-major, each row = [sr images | hr images];
    # input channels zero-padded to CP so every tap block is sublane-aligned
    # (padding costs nothing: 3 sublanes pad to 8 in a vreg anyway).
    x = jnp.concatenate([sr, hr], axis=0)                       # (2N, C, H, W)
    x_slab = jnp.transpose(x, (1, 0, 2, 3)).reshape(C, LANES)
    x_slab = jnp.pad(x_slab, ((0, CP - C), (0, 0))).astype(jnp.float32)

    # Static aux slab (mask rows constant-fold under jit; dmap row is one tiny
    # fused op depending on the random mask).
    mask = jax.random.randint(
        mask_key, (PATCH_SIZE, PATCH_SIZE), 0, 2).astype(jnp.float32)
    d_con_n = _distance_transform(mask) ** N_POW                # (H, W)
    aux = _build_aux(N, H, W, d_con_n)                          # (10, LANES)

    # Both conv layers' weights + biases packed into ONE (2, CO, KDIM) input.
    params = jnp.stack([_pack_layer(w1, b1, CP, KDIM),
                        _pack_layer(w2, b2, CP, KDIM)], axis=0)

    # Adversarial term is a mean over N scalars -> compute here, pass via SMEM.
    adv = jnp.mean(jnp.log(d_fake.astype(jnp.float32) + 1e-8)).reshape(1)

    kernel = _make_fused_kernel(N, C, H, W, CP, C1, C2)
    vmem = pl.BlockSpec(memory_space=pltpu.MemorySpace.VMEM)
    smem = pl.BlockSpec(memory_space=pltpu.MemorySpace.SMEM)
    out = pl.pallas_call(
        kernel,
        out_shape=jax.ShapeDtypeStruct((1,), jnp.float32),
        in_specs=[vmem, vmem, vmem, smem],
        out_specs=smem,
        scratch_shapes=[pltpu.VMEM((KDIM, LANES), jnp.float32)],
    )(x_slab, aux, params, adv)
    # Gridless single-TC launch: total VMEM working set is a few hundred KB,
    # so there is nothing to pipeline / shard at these shapes.
    return out[0]


# ---------------------------------------------------------------------------
# Main
# ---------------------------------------------------------------------------
if __name__ == "__main__":
    key = jax.random.PRNGKey(0)
    k_sr, k_hr, k_df, k_w1, k_w2, k_mask = jax.random.split(key, 6)

    N, C, H, W = 2, 3, PATCH_SIZE, PATCH_SIZE
    sr = jax.random.uniform(k_sr, (N, C, H, W), jnp.float32)
    hr = jax.random.uniform(k_hr, (N, C, H, W), jnp.float32)
    d_fake = jax.nn.sigmoid(jax.random.normal(k_df, (N, 1), jnp.float32))

    # TODO(synk): pretrained VGG19 feature extractor replaced by a deterministic
    # 2-layer conv3x3+ReLU stand-in (no checkpoint loading allowed in-script).
    C1, C2 = 8, 8
    w1 = 0.1 * jax.random.normal(k_w1, (C1, C, 3, 3), jnp.float32)
    b1 = jnp.zeros((C1,), jnp.float32)
    w2 = 0.1 * jax.random.normal(k_w2, (C2, C1, 3, 3), jnp.float32)
    b2 = jnp.zeros((C2,), jnp.float32)
    vgg_params = (w1, b1, w2, b2)

    loss_fn = jax.jit(snsrgan_loss)
    loss = loss_fn(sr, hr, d_fake, vgg_params, k_mask)
    loss = jax.block_until_ready(loss)
    assert jnp.isfinite(loss)
    print("KERNEL_OK")
</pallas_src>

<mosaic_0001>
module attributes {stable_mosaic.version = 11 : i64} {
  func.func @kernel(%arg0: memref<8x1024xf32, #tpu.memory_space<vmem>>, %arg1: memref<10x1024xf32, #tpu.memory_space<vmem>>, %arg2: memref<2x8x80xf32, #tpu.memory_space<vmem>>, %arg3: memref<1xf32, #tpu.memory_space<smem>>, %arg4: memref<1xf32, #tpu.memory_space<smem>>, %arg5: memref<80x1024xf32, #tpu.memory_space<vmem>>) attributes {dimension_semantics = [], scalar_prefetch = 0 : i64, scratch_operands = 1 : i64, tpu.core_type = #tpu.core_type<tc>} {
    %c0 = arith.constant 0 : index
    %c0_0 = arith.constant 0 : index
    %0 = vector.load %arg0[%c0, %c0_0] : memref<8x1024xf32, #tpu.memory_space<vmem>>, vector<8x1024xf32>
    %1 = tpu.iota {dimensions = array<i32: 0>} : vector<8x1024xi32>
    %c0_i32 = arith.constant 0 : i32
    %2 = vector.broadcast %c0_i32 : i32 to vector<8x1024xi32>
    %3 = arith.cmpi eq, %1, %2 : vector<8x1024xi32>
    %4 = arith.extui %3 : vector<8x1024xi1> to vector<8x1024xi32>
    %5 = arith.sitofp %4 : vector<8x1024xi32> to vector<8x1024xf32>
    %c72 = arith.constant 72 : index
    %c0_1 = arith.constant 0 : index
    %6 = vector.load %arg5[%c72, %c0_1] : memref<80x1024xf32, #tpu.memory_space<vmem>>, vector<8x1024xf32>
    tpu.vector_store %arg5[%c72, %c0_1], %5 {strides = array<i32>} : memref<80x1024xf32, #tpu.memory_space<vmem>>, vector<8x1024xf32>,
    %c17_i32 = arith.constant 17 : i32
    %7 = tpu.dynamic_rotate %0 by %c17_i32 dim 1 : vector<8x1024xf32>, i32 -> vector<8x1024xf32>
    %c0_2 = arith.constant 0 : index
    %c0_3 = arith.constant 0 : index
    %8 = vector.load %arg1[%c0_2, %c0_3] : memref<10x1024xf32, #tpu.memory_space<vmem>>, vector<1x1024xf32>
    %9 = vector.broadcast %8 : vector<1x1024xf32> to vector<8x1024xf32>
    %10 = arith.mulf %7, %9 : vector<8x1024xf32>
    %c0_4 = arith.constant 0 : index
    %c0_5 = arith.constant 0 : index
    %11 = vector.load %arg5[%c0_4, %c0_5] : memref<80x1024xf32, #tpu.memory_space<vmem>>, vector<8x1024xf32>
    tpu.vector_store %arg5[%c0_4, %c0_5], %10 {strides = array<i32>} : memref<80x1024xf32, #tpu.memory_space<vmem>>, vector<8x1024xf32>,
    %c16_i32 = arith.constant 16 : i32
    %12 = tpu.dynamic_rotate %0 by %c16_i32 dim 1 : vector<8x1024xf32>, i32 -> vector<8x1024xf32>
    %c1 = arith.constant 1 : index
    %c0_6 = arith.constant 0 : index
    %13 = vector.load %arg1[%c1, %c0_6] : memref<10x1024xf32, #tpu.memory_space<vmem>>, vector<1x1024xf32>
    %14 = vector.broadcast %13 : vector<1x1024xf32> to vector<8x1024xf32>
    %15 = arith.mulf %12, %14 : vector<8x1024xf32>
    %c8 = arith.constant 8 : index
    %c0_7 = arith.constant 0 : index
    %16 = vector.load %arg5[%c8, %c0_7] : memref<80x1024xf32, #tpu.memory_space<vmem>>, vector<8x1024xf32>
    tpu.vector_store %arg5[%c8, %c0_7], %15 {strides = array<i32>} : memref<80x1024xf32, #tpu.memory_space<vmem>>, vector<8x1024xf32>,
    %c15_i32 = arith.constant 15 : i32
    %17 = tpu.dynamic_rotate %0 by %c15_i32 dim 1 : vector<8x1024xf32>, i32 -> vector<8x1024xf32>
    %c2 = arith.constant 2 : index
    %c0_8 = arith.constant 0 : index
    %18 = vector.load %arg1[%c2, %c0_8] : memref<10x1024xf32, #tpu.memory_space<vmem>>, vector<1x1024xf32>
    %19 = vector.broadcast %18 : vector<1x1024xf32> to vector<8x1024xf32>
    %20 = arith.mulf %17, %19 : vector<8x1024xf32>
    %c16 = arith.constant 16 : index
    %c0_9 = arith.constant 0 : index
    %21 = vector.load %arg5[%c16, %c0_9] : memref<80x1024xf32, #tpu.memory_space<vmem>>, vector<8x1024xf32>
    tpu.vector_store %arg5[%c16, %c0_9], %20 {strides = array<i32>} : memref<80x1024xf32, #tpu.memory_space<vmem>>, vector<8x1024xf32>,
    %c1_i32 = arith.constant 1 : i32
    %22 = tpu.dynamic_rotate %0 by %c1_i32 dim 1 : vector<8x1024xf32>, i32 -> vector<8x1024xf32>
    %c3 = arith.constant 3 : index
    %c0_10 = arith.constant 0 : index
    %23 = vector.load %arg1[%c3, %c0_10] : memref<10x1024xf32, #tpu.memory_space<vmem>>, vector<1x1024xf32>
    %24 = vector.broadcast %23 : vector<1x1024xf32> to vector<8x1024xf32>
    %25 = arith.mulf %22, %24 : vector<8x1024xf32>
    %c24 = arith.constant 24 : index
    %c0_11 = arith.constant 0 : index
    %26 = vector.load %arg5[%c24, %c0_11] : memref<80x1024xf32, #tpu.memory_space<vmem>>, vector<8x1024xf32>
    tpu.vector_store %arg5[%c24, %c0_11], %25 {strides = array<i32>} : memref<80x1024xf32, #tpu.memory_space<vmem>>, vector<8x1024xf32>,
    %c32 = arith.constant 32 : index
    %c0_12 = arith.constant 0 : index
    %27 = vector.load %arg5[%c32, %c0_12] : memref<80x1024xf32, #tpu.memory_space<vmem>>, vector<8x1024xf32>
    tpu.vector_store %arg5[%c32, %c0_12], %0 {strides = array<i32>} : memref<80x1024xf32, #tpu.memory_space<vmem>>, vector<8x1024xf32>,
    %c1023_i32 = arith.constant 1023 : i32
    %28 = tpu.dynamic_rotate %0 by %c1023_i32 dim 1 : vector<8x1024xf32>, i32 -> vector<8x1024xf32>
    %c5 = arith.constant 5 : index
    %c0_13 = arith.constant 0 : index
    %29 = vector.load %arg1[%c5, %c0_13] : memref<10x1024xf32, #tpu.memory_space<vmem>>, vector<1x1024xf32>
    %30 = vector.broadcast %29 : vector<1x1024xf32> to vector<8x1024xf32>
    %31 = arith.mulf %28, %30 : vector<8x1024xf32>
    %c40 = arith.constant 40 : index
    %c0_14 = arith.constant 0 : index
    %32 = vector.load %arg5[%c40, %c0_14] : memref<80x1024xf32, #tpu.memory_space<vmem>>, vector<8x1024xf32>
    tpu.vector_store %arg5[%c40, %c0_14], %31 {strides = array<i32>} : memref<80x1024xf32, #tpu.memory_space<vmem>>, vector<8x1024xf32>,
    %c1009_i32 = arith.constant 1009 : i32
    %33 = tpu.dynamic_rotate %0 by %c1009_i32 dim 1 : vector<8x1024xf32>, i32 -> vector<8x1024xf32>
    %c6 = arith.constant 6 : index
    %c0_15 = arith.constant 0 : index
    %34 = vector.load %arg1[%c6, %c0_15] : memref<10x1024xf32, #tpu.memory_space<vmem>>, vector<1x1024xf32>
    %35 = vector.broadcast %34 : vector<1x1024xf32> to vector<8x1024xf32>
    %36 = arith.mulf %33, %35 : vector<8x1024xf32>
    %c48 = arith.constant 48 : index
    %c0_16 = arith.constant 0 : index
    %37 = vector.load %arg5[%c48, %c0_16] : memref<80x1024xf32, #tpu.memory_space<vmem>>, vector<8x1024xf32>
    tpu.vector_store %arg5[%c48, %c0_16], %36 {strides = array<i32>} : memref<80x1024xf32, #tpu.memory_space<vmem>>, vector<8x1024xf32>,
    %c1008_i32 = arith.constant 1008 : i32
    %38 = tpu.dynamic_rotate %0 by %c1008_i32 dim 1 : vector<8x1024xf32>, i32 -> vector<8x1024xf32>
    %c7 = arith.constant 7 : index
    %c0_17 = arith.constant 0 : index
    %39 = vector.load %arg1[%c7, %c0_17] : memref<10x1024xf32, #tpu.memory_space<vmem>>, vector<1x1024xf32>
    %40 = vector.broadcast %39 : vector<1x1024xf32> to vector<8x1024xf32>
    %41 = arith.mulf %38, %40 : vector<8x1024xf32>
    %c56 = arith.constant 56 : index
    %c0_18 = arith.constant 0 : index
    %42 = vector.load %arg5[%c56, %c0_18] : memref<80x1024xf32, #tpu.memory_space<vmem>>, vector<8x1024xf32>
    tpu.vector_store %arg5[%c56, %c0_18], %41 {strides = array<i32>} : memref<80x1024xf32, #tpu.memory_space<vmem>>, vector<8x1024xf32>,
    %c1007_i32 = arith.constant 1007 : i32
    %43 = tpu.dynamic_rotate %0 by %c1007_i32 dim 1 : vector<8x1024xf32>, i32 -> vector<8x1024xf32>
    %c8_19 = arith.constant 8 : index
    %c0_20 = arith.constant 0 : index
    %44 = vector.load %arg1[%c8_19, %c0_20] : memref<10x1024xf32, #tpu.memory_space<vmem>>, vector<1x1024xf32>
    %45 = vector.broadcast %44 : vector<1x1024xf32> to vector<8x1024xf32>
    %46 = arith.mulf %43, %45 : vector<8x1024xf32>
    %c64 = arith.constant 64 : index
    %c0_21 = arith.constant 0 : index
    %47 = vector.load %arg5[%c64, %c0_21] : memref<80x1024xf32, #tpu.memory_space<vmem>>, vector<8x1024xf32>
    tpu.vector_store %arg5[%c64, %c0_21], %46 {strides = array<i32>} : memref<80x1024xf32, #tpu.memory_space<vmem>>, vector<8x1024xf32>,
    %c0_22 = arith.constant 0 : index
    %c0_23 = arith.constant 0 : index
    %c0_24 = arith.constant 0 : index
    %48 = vector.load %arg2[%c0_22, %c0_23, %c0_24] : memref<2x8x80xf32, #tpu.memory_space<vmem>>, vector<1x8x80xf32>
    %49 = vector.shape_cast %48 : vector<1x8x80xf32> to vector<8x80xf32>
    %c0_25 = arith.constant 0 : index
    %c0_26 = arith.constant 0 : index
    %50 = vector.load %arg5[%c0_25, %c0_26] : memref<80x1024xf32, #tpu.memory_space<vmem>>, vector<80x1024xf32>
    %cst = arith.constant dense<0.000000e+00> : vector<8x1024xf32>
    %51 = tpu.matmul %49, %50, %cst {dimension_numbers = #tpu.dot_dimension_numbers<[1], [0], [0], [1], [0, 0, 1, 1], [], []>} : vector<8x80xf32>, vector<80x1024xf32>, vector<8x1024xf32> -> vector<8x1024xf32>
    %cst_27 = arith.constant 0.000000e+00 : f32
    %52 = vector.broadcast %cst_27 : f32 to vector<8x1024xf32>
    %53 = arith.maximumf %51, %52 : vector<8x1024xf32>
    %c17_i32_28 = arith.constant 17 : i32
    %54 = tpu.dynamic_rotate %53 by %c17_i32_28 dim 1 : vector<8x1024xf32>, i32 -> vector<8x1024xf32>
    %c0_29 = arith.constant 0 : index
    %c0_30 = arith.constant 0 : index
    %55 = vector.load %arg1[%c0_29, %c0_30] : memref<10x1024xf32, #tpu.memory_space<vmem>>, vector<1x1024xf32>
    %56 = vector.broadcast %55 : vector<1x1024xf32> to vector<8x1024xf32>
    %57 = arith.mulf %54, %56 : vector<8x1024xf32>
    %c0_31 = arith.constant 0 : index
    %c0_32 = arith.constant 0 : index
    %58 = vector.load %arg5[%c0_31, %c0_32] : memref<80x1024xf32, #tpu.memory_space<vmem>>, vector<8x1024xf32>
    tpu.vector_store %arg5[%c0_31, %c0_32], %57 {strides = array<i32>} : memref<80x1024xf32, #tpu.memory_space<vmem>>, vector<8x1024xf32>,
    %c16_i32_33 = arith.constant 16 : i32
    %59 = tpu.dynamic_rotate %53 by %c16_i32_33 dim 1 : vector<8x1024xf32>, i32 -> vector<8x1024xf32>
    %c1_34 = arith.constant 1 : index
    %c0_35 = arith.constant 0 : index
    %60 = vector.load %arg1[%c1_34, %c0_35] : memref<10x1024xf32, #tpu.memory_space<vmem>>, vector<1x1024xf32>
    %61 = vector.broadcast %60 : vector<1x1024xf32> to vector<8x1024xf32>
    %62 = arith.mulf %59, %61 : vector<8x1024xf32>
    %c8_36 = arith.constant 8 : index
    %c0_37 = arith.constant 0 : index
    %63 = vector.load %arg5[%c8_36, %c0_37] : memref<80x1024xf32, #tpu.memory_space<vmem>>, vector<8x1024xf32>
    tpu.vector_store %arg5[%c8_36, %c0_37], %62 {strides = array<i32>} : memref<80x1024xf32, #tpu.memory_space<vmem>>, vector<8x1024xf32>,
    %c15_i32_38 = arith.constant 15 : i32
    %64 = tpu.dynamic_rotate %53 by %c15_i32_38 dim 1 : vector<8x1024xf32>, i32 -> vector<8x1024xf32>
    %c2_39 = arith.constant 2 : index
    %c0_40 = arith.constant 0 : index
    %65 = vector.load %arg1[%c2_39, %c0_40] : memref<10x1024xf32, #tpu.memory_space<vmem>>, vector<1x1024xf32>
    %66 = vector.broadcast %65 : vector<1x1024xf32> to vector<8x1024xf32>
    %67 = arith.mulf %64, %66 : vector<8x1024xf32>
    %c16_41 = arith.constant 16 : index
    %c0_42 = arith.constant 0 : index
    %68 = vector.load %arg5[%c16_41, %c0_42] : memref<80x1024xf32, #tpu.memory_space<vmem>>, vector<8x1024xf32>
    tpu.vector_store %arg5[%c16_41, %c0_42], %67 {strides = array<i32>} : memref<80x1024xf32, #tpu.memory_space<vmem>>, vector<8x1024xf32>,
    %c1_i32_43 = arith.constant 1 : i32
    %69 = tpu.dynamic_rotate %53 by %c1_i32_43 dim 1 : vector<8x1024xf32>, i32 -> vector<8x1024xf32>
    %c3_44 = arith.constant 3 : index
    %c0_45 = arith.constant 0 : index
    %70 = vector.load %arg1[%c3_44, %c0_45] : memref<10x1024xf32, #tpu.memory_space<vmem>>, vector<1x1024xf32>
    %71 = vector.broadcast %70 : vector<1x1024xf32> to vector<8x1024xf32>
    %72 = arith.mulf %69, %71 : vector<8x1024xf32>
    %c24_46 = arith.constant 24 : index
    %c0_47 = arith.constant 0 : index
    %73 = vector.load %arg5[%c24_46, %c0_47] : memref<80x1024xf32, #tpu.memory_space<vmem>>, vector<8x1024xf32>
    tpu.vector_store %arg5[%c24_46, %c0_47], %72 {strides = array<i32>} : memref<80x1024xf32, #tpu.memory_space<vmem>>, vector<8x1024xf32>,
    %c32_48 = arith.constant 32 : index
    %c0_49 = arith.constant 0 : index
    %74 = vector.load %arg5[%c32_48, %c0_49] : memref<80x1024xf32, #tpu.memory_space<vmem>>, vector<8x1024xf32>
    tpu.vector_store %arg5[%c32_48, %c0_49], %53 {strides = array<i32>} : memref<80x1024xf32, #tpu.memory_space<vmem>>, vector<8x1024xf32>,
    %c1023_i32_50 = arith.constant 1023 : i32
    %75 = tpu.dynamic_rotate %53 by %c1023_i32_50 dim 1 : vector<8x1024xf32>, i32 -> vector<8x1024xf32>
    %c5_51 = arith.constant 5 : index
    %c0_52 = arith.constant 0 : index
    %76 = vector.load %arg1[%c5_51, %c0_52] : memref<10x1024xf32, #tpu.memory_space<vmem>>, vector<1x1024xf32>
    %77 = vector.broadcast %76 : vector<1x1024xf32> to vector<8x1024xf32>
    %78 = arith.mulf %75, %77 : vector<8x1024xf32>
    %c40_53 = arith.constant 40 : index
    %c0_54 = arith.constant 0 : index
    %79 = vector.load %arg5[%c40_53, %c0_54] : memref<80x1024xf32, #tpu.memory_space<vmem>>, vector<8x1024xf32>
    tpu.vector_store %arg5[%c40_53, %c0_54], %78 {strides = array<i32>} : memref<80x1024xf32, #tpu.memory_space<vmem>>, vector<8x1024xf32>,
    %c1009_i32_55 = arith.constant 1009 : i32
    %80 = tpu.dynamic_rotate %53 by %c1009_i32_55 dim 1 : vector<8x1024xf32>, i32 -> vector<8x1024xf32>
    %c6_56 = arith.constant 6 : index
    %c0_57 = arith.constant 0 : index
    %81 = vector.load %arg1[%c6_56, %c0_57] : memref<10x1024xf32, #tpu.memory_space<vmem>>, vector<1x1024xf32>
    %82 = vector.broadcast %81 : vector<1x1024xf32> to vector<8x1024xf32>
    %83 = arith.mulf %80, %82 : vector<8x1024xf32>
    %c48_58 = arith.constant 48 : index
    %c0_59 = arith.constant 0 : index
    %84 = vector.load %arg5[%c48_58, %c0_59] : memref<80x1024xf32, #tpu.memory_space<vmem>>, vector<8x1024xf32>
    tpu.vector_store %arg5[%c48_58, %c0_59], %83 {strides = array<i32>} : memref<80x1024xf32, #tpu.memory_space<vmem>>, vector<8x1024xf32>,
    %c1008_i32_60 = arith.constant 1008 : i32
    %85 = tpu.dynamic_rotate %53 by %c1008_i32_60 dim 1 : vector<8x1024xf32>, i32 -> vector<8x1024xf32>
    %c7_61 = arith.constant 7 : index
    %c0_62 = arith.constant 0 : index
    %86 = vector.load %arg1[%c7_61, %c0_62] : memref<10x1024xf32, #tpu.memory_space<vmem>>, vector<1x1024xf32>
    %87 = vector.broadcast %86 : vector<1x1024xf32> to vector<8x1024xf32>
    %88 = arith.mulf %85, %87 : vector<8x1024xf32>
    %c56_63 = arith.constant 56 : index
    %c0_64 = arith.constant 0 : index
    %89 = vector.load %arg5[%c56_63, %c0_64] : memref<80x1024xf32, #tpu.memory_space<vmem>>, vector<8x1024xf32>
    tpu.vector_store %arg5[%c56_63, %c0_64], %88 {strides = array<i32>} : memref<80x1024xf32, #tpu.memory_space<vmem>>, vector<8x1024xf32>,
    %c1007_i32_65 = arith.constant 1007 : i32
    %90 = tpu.dynamic_rotate %53 by %c1007_i32_65 dim 1 : vector<8x1024xf32>, i32 -> vector<8x1024xf32>
    %c8_66 = arith.constant 8 : index
    %c0_67 = arith.constant 0 : index
    %91 = vector.load %arg1[%c8_66, %c0_67] : memref<10x1024xf32, #tpu.memory_space<vmem>>, vector<1x1024xf32>
    %92 = vector.broadcast %91 : vector<1x1024xf32> to vector<8x1024xf32>
    %93 = arith.mulf %90, %92 : vector<8x1024xf32>
    %c64_68 = arith.constant 64 : index
    %c0_69 = arith.constant 0 : index
    %94 = vector.load %arg5[%c64_68, %c0_69] : memref<80x1024xf32, #tpu.memory_space<vmem>>, vector<8x1024xf32>
    tpu.vector_store %arg5[%c64_68, %c0_69], %93 {strides = array<i32>} : memref<80x1024xf32, #tpu.memory_space<vmem>>, vector<8x1024xf32>,
    %c1_70 = arith.constant 1 : index
    %c0_71 = arith.constant 0 : index
    %c0_72 = arith.constant 0 : index
    %95 = vector.load %arg2[%c1_70, %c0_71, %c0_72] : memref<2x8x80xf32, #tpu.memory_space<vmem>>, vector<1x8x80xf32>
    %96 = vector.shape_cast %95 : vector<1x8x80xf32> to vector<8x80xf32>
    %c0_73 = arith.constant 0 : index
    %c0_74 = arith.constant 0 : index
    %97 = vector.load %arg5[%c0_73, %c0_74] : memref<80x1024xf32, #tpu.memory_space<vmem>>, vector<80x1024xf32>
    %cst_75 = arith.constant dense<0.000000e+00> : vector<8x1024xf32>
    %98 = tpu.matmul %96, %97, %cst_75 {dimension_numbers = #tpu.dot_dimension_numbers<[1], [0], [0], [1], [0, 0, 1, 1], [], []>} : vector<8x80xf32>, vector<80x1024xf32>, vector<8x1024xf32> -> vector<8x1024xf32>
    %cst_76 = arith.constant 0.000000e+00 : f32
    %99 = vector.broadcast %cst_76 : f32 to vector<8x1024xf32>
    %100 = arith.maximumf %98, %99 : vector<8x1024xf32>
    %101 = vector.extract_strided_slice %0 {offsets = [0, 0], sizes = [8, 512], strides = [1, 1]} : vector<8x1024xf32> to vector<8x512xf32>
    %102 = vector.extract_strided_slice %0 {offsets = [0, 512], sizes = [8, 512], strides = [1, 1]} : vector<8x1024xf32> to vector<8x512xf32>
    %103 = vector.extract_strided_slice %100 {offsets = [0, 0], sizes = [8, 512], strides = [1, 1]} : vector<8x1024xf32> to vector<8x512xf32>
    %104 = vector.extract_strided_slice %100 {offsets = [0, 512], sizes = [8, 512], strides = [1, 1]} : vector<8x1024xf32> to vector<8x512xf32>
    %c7_77 = arith.constant 7 : index
    %c0_78 = arith.constant 0 : index
    %105 = vector.load %arg1[%c7_77, %c0_78] : memref<10x1024xf32, #tpu.memory_space<vmem>>, vector<1x512xf32>
    %c5_79 = arith.constant 5 : index
    %c0_80 = arith.constant 0 : index
    %106 = vector.load %arg1[%c5_79, %c0_80] : memref<10x1024xf32, #tpu.memory_space<vmem>>, vector<1x512xf32>
    %c9 = arith.constant 9 : index
    %c0_81 = arith.constant 0 : index
    %107 = vector.load %arg1[%c9, %c0_81] : memref<10x1024xf32, #tpu.memory_space<vmem>>, vector<1x512xf32>
    %108 = arith.subf %102, %101 : vector<8x512xf32>
    %c496_i32 = arith.constant 496 : i32
    %109 = tpu.dynamic_rotate %101 by %c496_i32 dim 1 : vector<8x512xf32>, i32 -> vector<8x512xf32>
    %110 = arith.subf %109, %101 : vector<8x512xf32>
    %111 = vector.broadcast %105 : vector<1x512xf32> to vector<8x512xf32>
    %112 = arith.mulf %110, %111 : vector<8x512xf32>
    %c511_i32 = arith.constant 511 : i32
    %113 = tpu.dynamic_rotate %101 by %c511_i32 dim 1 : vector<8x512xf32>, i32 -> vector<8x512xf32>
    %114 = arith.subf %113, %101 : vector<8x512xf32>
    %115 = vector.broadcast %106 : vector<1x512xf32> to vector<8x512xf32>
    %116 = arith.mulf %114, %115 : vector<8x512xf32>
    %117 = vector.broadcast %107 : vector<1x512xf32> to vector<8x512xf32>
    %118 = arith.mulf %108, %117 : vector<8x512xf32>
    %119 = arith.subf %103, %104 : vector<8x512xf32>
    %120 = arith.mulf %108, %108 : vector<8x512xf32>
    %cst_82 = arith.constant 6.51041686E-4 : f32
    %121 = vector.broadcast %cst_82 : f32 to vector<8x512xf32>
    %122 = arith.mulf %121, %120 : vector<8x512xf32>
    %123 = arith.mulf %112, %112 : vector<8x512xf32>
    %124 = arith.mulf %116, %116 : vector<8x512xf32>
    %125 = arith.addf %123, %124 : vector<8x512xf32>
    %cst_83 = arith.constant 9.99999997E-7 : f32
    %126 = vector.broadcast %cst_83 : f32 to vector<8x512xf32>
    %127 = arith.mulf %126, %125 : vector<8x512xf32>
    %128 = arith.addf %122, %127 : vector<8x512xf32>
    %129 = arith.mulf %118, %118 : vector<8x512xf32>
    %cst_84 = arith.constant 3.2552085E-5 : f32
    %130 = vector.broadcast %cst_84 : f32 to vector<8x512xf32>
    %131 = arith.mulf %130, %129 : vector<8x512xf32>
    %132 = arith.addf %128, %131 : vector<8x512xf32>
    %133 = arith.mulf %119, %119 : vector<8x512xf32>
    %cst_85 = arith.constant 2.44140637E-7 : f32
    %134 = vector.broadcast %cst_85 : f32 to vector<8x512xf32>
    %135 = arith.mulf %134, %133 : vector<8x512xf32>
    %136 = arith.addf %132, %135 : vector<8x512xf32>
    %c0_86 = arith.constant 0 : index
    %137 = memref.load %arg3[%c0_86] : memref<1xf32, #tpu.memory_space<smem>>
    %138 = vector.shape_cast %136 : vector<8x512xf32> to vector<1x8x512xf32>
    %cst_87 = arith.constant dense<0.000000e+00> : vector<1xf32>
    %139 = vector.multi_reduction <add>, %138, %cst_87 [1, 2] : vector<1x8x512xf32> to vector<1xf32>
    %140 = vector.shape_cast %139 : vector<1xf32> to vector<1x1x1xf32>
    %141 = vector.extract %140[0, 0, 0] : f32 from vector<1x1x1xf32>
    %142 = arith.addf %137, %141 : f32
    %c0_88 = arith.constant 0 : index
    %143 = memref.load %arg4[%c0_88] : memref<1xf32, #tpu.memory_space<smem>>
    memref.store %142, %arg4[%c0_88] : memref<1xf32, #tpu.memory_space<smem>>
    return
  }
}

</mosaic_0001>

<llo_original>
// kernel: tile.6
$region0: #{tile.6}
  #allocation0 [shape = 's32[1]{0}', space=sflag, size = 0x4, scoped, tag = 'scoped memory for tile.6']
  %s0 = inlined_call_operand.vmem [shape: f32[256], index: 0, kind: input, shape index: {}]
  %s1 = inlined_call_operand.vmem [shape: f32[2,1,1,256], index: 1, kind: output, shape index: {}]
  // Predicated region
  $region2: #{tile.6} parent=0 // pred_check
    _
  $region3: #{tile.6} parent=0 // pred_check_branch
    %3 = sbr.rel (0) target = $region5
  $region4: #{tile.6} parent=0 // pred_region
    _
  $region5: #{tile.6} parent=0 // pred_fallthru
    _
  %v4 = vld [vmem:[%s0] ss:$0 sm:$0xff]
  %5 = vst [vmem:[%s1] sm:$0x1] %v4
  %s6 = scalar_lea.vmem %s1, 2
  %7 = vst [vmem:[%s6] sm:$0x1] %v4
  %s8 = scalar_lea.vmem %s0, 1
  %v9 = vld [vmem:[%s8] ss:$0 sm:$0xff]
  %s10 = scalar_lea.vmem %s1, 1
  %11 = vst [vmem:[%s10] sm:$0x1] %v9
  %s12 = scalar_lea.vmem %s1, 3
  %13 = vst [vmem:[%s12] sm:$0x1] %v9

// kernel: snsrgan_loss.1
$region0: #{snsrgan_loss.1}
  #allocation0 [shape = 'u32[]', space=smem, size = 0x4, offset = 0x4, fixed_abs, tag = 'smem constant byte address 0x4 - core index']
  #allocation1 [shape = 'u32[72,128]{1,0:T(1,128)}', space=vmem, size = 0x9000, scoped, tag = 'internal scratch']
  #allocation2 [shape = 'f32[80,1024]{1,0:T(8,128)}', space=vmem, size = 0x50000, scoped, tag = 'scratch operand']
  #allocation3 [shape = 'f32[1]{0:T(128)S(6)}', space=smem, size = 0x200, scoped, tag = 'scoped memory for snsrgan_loss.1']
  %s0 = inlined_call_operand.vmem [shape: f32[8,1024], index: 0, kind: input, shape index: {}]
  %s1 = inlined_call_operand.vmem [shape: f32[10,1024], index: 1, kind: input, shape index: {}]
  %s2 = inlined_call_operand.vmem [shape: f32[2,8,80], index: 2, kind: input, shape index: {}]
  %s3 = inlined_call_operand.<no memory space> [shape: f32[1], index: 3, kind: input, shape index: {}]
  %s4 = inlined_call_operand.hbm [shape: f32[1], index: 4, kind: output, shape index: {}]
  %s5 = sld [smem:[#allocation0]]
  $region26: #{snsrgan_loss.1} parent=0
    _
  %s7 = ssub.s32 1, %s5
  %s8 = scalar_select 0, %s7, %s5
  %9 = sst [smem:[#allocation3]] %s3
  $region1: #{snsrgan_loss.1} parent=0
    #allocation4 [shape = 'u8[512]{0}', space=smem, size = 0x200, scoped, tag = 'output window, operand 0, single buffered']
    #allocation5 [shape = 's32[1]{0}', space=sflag, size = 0x4, scoped, tag = 'scoped memory for snsrgan_loss.1']
    %10 = vsyncpa [#allocation5], 0
    // Predicated region
    $region2: #{snsrgan_loss.1} parent=1 // pred_check
      _
    $region3: #{snsrgan_loss.1} parent=1 // pred_check_branch
      %12 = sbr.rel (0) target = $region5
    $region4: #{snsrgan_loss.1} parent=1 // pred_region
      _
    $region5: #{snsrgan_loss.1} parent=1 // pred_fallthru
      _
    // Predicated region
    $region6: #{snsrgan_loss.1} parent=1 // pred_check
      _
    $region7: #{snsrgan_loss.1} parent=1 // pred_check_branch
      %14 = sbr.rel (0) target = $region9
    $region8: #{snsrgan_loss.1} parent=1 // pred_region
      _
    $region9: #{snsrgan_loss.1} parent=1 // pred_fallthru
      _
    // Predicated region
    $region10: #{snsrgan_loss.1} parent=1 // pred_check
      _
    $region11: #{snsrgan_loss.1} parent=1 // pred_check_branch
      %16 = sbr.rel (0) target = $region13
    $region12: #{snsrgan_loss.1} parent=1 // pred_region
      _
    $region13: #{snsrgan_loss.1} parent=1 // pred_fallthru
      _
    // Predicated region
    $region14: #{snsrgan_loss.1} parent=1 // pred_check
      _
    $region15: #{snsrgan_loss.1} parent=1 // pred_check_branch
      %18 = sbr.rel (0) target = $region17
    $region16: #{snsrgan_loss.1} parent=1 // pred_region
      _
    $region17: #{snsrgan_loss.1} parent=1 // pred_fallthru
      _
    %v19 = vld [vmem:[%s0] sm:$0xff]
    %v20 = vld [vmem:[%s0 + $0x8] sm:$0xff]
    %v21 = vld [vmem:[%s0 + $0x10] sm:$0xff]
    %v22 = vld [vmem:[%s0 + $0x18] sm:$0xff]
    %v23 = vld [vmem:[%s0 + $0x20] sm:$0xff]
    %v24 = vld [vmem:[%s0 + $0x28] sm:$0xff]
    %v25 = vld [vmem:[%s0 + $0x30] sm:$0xff]
    %v26 = vld [vmem:[%s0 + $0x38] sm:$0xff]
    %v27 = vlaneseq
    %v28 = vshrl.u32 %v27, 7
    %vm29 = vcmp.eq.s32.totalorder %v28, 0
    %v30 = vsel %vm29, 1, 0
    %v31 = vcvt.s32.f32 %v30
    %32 = vst [vmem:[#allocation2 + $0x240] sm:$0xff] %v31
    %33 = vst [vmem:[#allocation2 + $0x248] sm:$0xff] %v31
    %34 = vst [vmem:[#allocation2 + $0x250] sm:$0xff] %v31
    %35 = vst [vmem:[#allocation2 + $0x258] sm:$0xff] %v31
    %36 = vst [vmem:[#allocation2 + $0x260] sm:$0xff] %v31
    %37 = vst [vmem:[#allocation2 + $0x268] sm:$0xff] %v31
    %38 = vst [vmem:[#allocation2 + $0x270] sm:$0xff] %v31
    %39 = vst [vmem:[#allocation2 + $0x278] sm:$0xff] %v31
    %40 = vrot.lane.b32.xlu0 %v19, 17
    %v41 = vpop.permute.xlu0 %40
    %42 = vrot.lane.b32.xlu0 %v20, 17
    %v43 = vpop.permute.xlu0 %42
    %44 = vrot.lane.b32.xlu0 %v21, 17
    %v45 = vpop.permute.xlu0 %44
    %46 = vrot.lane.b32.xlu0 %v22, 17
    %v47 = vpop.permute.xlu0 %46
    %48 = vrot.lane.b32.xlu0 %v23, 17
    %v49 = vpop.permute.xlu0 %48
    %50 = vrot.lane.b32.xlu0 %v24, 17
    %v51 = vpop.permute.xlu0 %50
    %52 = vrot.lane.b32.xlu0 %v25, 17
    %v53 = vpop.permute.xlu0 %52
    %54 = vrot.lane.b32.xlu0 %v26, 17
    %v55 = vpop.permute.xlu0 %54
    %v56 = vlaneseq
    %v57 = vand.u32 %v56, 127
    %vm58 = vcmp.lt.s32.totalorder %v57, 17
    %v59 = vsel %vm58, %v53, %v55
    %v60 = vsel %vm58, %v51, %v53
    %v61 = vsel %vm58, %v49, %v51
    %v62 = vsel %vm58, %v47, %v49
    %v63 = vsel %vm58, %v45, %v47
    %v64 = vsel %vm58, %v43, %v45
    %v65 = vsel %vm58, %v41, %v43
    %v66 = vsel %vm58, %v55, %v41
    %v67 = vld [vmem:[%s1] ss:$8 sm:$0xf]
    %v68 = vld [vmem:[%s1] ss:$8 sm:$0xf0]
    %v69 = vor.u32 %v67, %v68
    %v71 = vperm.slane %v69, 0
    %v72 = vperm.slane %v69, 1
    %v73 = vperm.slane %v69, 2
    %v74 = vperm.slane %v69, 3
    %v75 = vperm.slane %v69, 4
    %v76 = vperm.slane %v69, 5
    %v77 = vperm.slane %v69, 6
    %v78 = vperm.slane %v69, 7
    %v87 = vmul.f32 %v66, %v71
    %v88 = vmul.f32 %v65, %v72
    %v89 = vmul.f32 %v64, %v73
    %v90 = vmul.f32 %v63, %v74
    %v91 = vmul.f32 %v62, %v75
    %v92 = vmul.f32 %v61, %v76
    %v93 = vmul.f32 %v60, %v77
    %v94 = vmul.f32 %v59, %v78
    %95 = vst [vmem:[#allocation2] sm:$0xff] %v87
    %96 = vst [vmem:[#allocation2 + $0x8] sm:$0xff] %v88
    %97 = vst [vmem:[#allocation2 + $0x10] sm:$0xff] %v89
    %98 = vst [vmem:[#allocation2 + $0x18] sm:$0xff] %v90
    %99 = vst [vmem:[#allocation2 + $0x20] sm:$0xff] %v91
    %100 = vst [vmem:[#allocation2 + $0x28] sm:$0xff] %v92
    %101 = vst [vmem:[#allocation2 + $0x30] sm:$0xff] %v93
    %102 = vst [vmem:[#allocation2 + $0x38] sm:$0xff] %v94
    %103 = vrot.lane.b32.xlu0 %v19, 16
    %v104 = vpop.permute.xlu0 %103
    %105 = vrot.lane.b32.xlu0 %v20, 16
    %v106 = vpop.permute.xlu0 %105
    %107 = vrot.lane.b32.xlu0 %v21, 16
    %v108 = vpop.permute.xlu0 %107
    %109 = vrot.lane.b32.xlu0 %v22, 16
    %v110 = vpop.permute.xlu0 %109
    %111 = vrot.lane.b32.xlu0 %v23, 16
    %v112 = vpop.permute.xlu0 %111
    %113 = vrot.lane.b32.xlu0 %v24, 16
    %v114 = vpop.permute.xlu0 %113
    %115 = vrot.lane.b32.xlu0 %v25, 16
    %v116 = vpop.permute.xlu0 %115
    %117 = vrot.lane.b32.xlu0 %v26, 16
    %v118 = vpop.permute.xlu0 %117
    %vm119 = vcmp.lt.s32.totalorder %v57, 16
    %v120 = vsel %vm119, %v116, %v118
    %v121 = vsel %vm119, %v114, %v116
    %v122 = vsel %vm119, %v112, %v114
    %v123 = vsel %vm119, %v110, %v112
    %v124 = vsel %vm119, %v108, %v110
    %v125 = vsel %vm119, %v106, %v108
    %v126 = vsel %vm119, %v104, %v106
    %v127 = vsel %vm119, %v118, %v104
    %s128 = scalar_lea.vmem %s1, 1
    %v129 = vld [vmem:[%s128] ss:$8 sm:$0xf]
    %v130 = vld [vmem:[%s128] ss:$8 sm:$0xf0]
    %v131 = vor.u32 %v129, %v130
    %v133 = vperm.slane %v131, 0
    %v134 = vperm.slane %v131, 1
    %v135 = vperm.slane %v131, 2
    %v136 = vperm.slane %v131, 3
    %v137 = vperm.slane %v131, 4
    %v138 = vperm.slane %v131, 5
    %v139 = vperm.slane %v131, 6
    %v140 = vperm.slane %v131, 7
    %v149 = vmul.f32 %v127, %v133
    %v150 = vmul.f32 %v126, %v134
    %v151 = vmul.f32 %v125, %v135
    %v152 = vmul.f32 %v124, %v136
    %v153 = vmul.f32 %v123, %v137
    %v154 = vmul.f32 %v122, %v138
    %v155 = vmul.f32 %v121, %v139
    %v156 = vmul.f32 %v120, %v140
    %157 = vst [vmem:[#allocation2 + $0x40] sm:$0xff] %v149
    %158 = vst [vmem:[#allocation2 + $0x48] sm:$0xff] %v150
    %159 = vst [vmem:[#allocation2 + $0x50] sm:$0xff] %v151
    %160 = vst [vmem:[#allocation2 + $0x58] sm:$0xff] %v152
    %161 = vst [vmem:[#allocation2 + $0x60] sm:$0xff] %v153
    %162 = vst [vmem:[#allocation2 + $0x68] sm:$0xff] %v154
    %163 = vst [vmem:[#allocation2 + $0x70] sm:$0xff] %v155
    %164 = vst [vmem:[#allocation2 + $0x78] sm:$0xff] %v156
    %165 = vrot.lane.b32.xlu0 %v19, 15
    %v166 = vpop.permute.xlu0 %165
    %167 = vrot.lane.b32.xlu0 %v20, 15
    %v168 = vpop.permute.xlu0 %167
    %169 = vrot.lane.b32.xlu0 %v21, 15
    %v170 = vpop.permute.xlu0 %169
    %171 = vrot.lane.b32.xlu0 %v22, 15
    %v172 = vpop.permute.xlu0 %171
    %173 = vrot.lane.b32.xlu0 %v23, 15
    %v174 = vpop.permute.xlu0 %173
    %175 = vrot.lane.b32.xlu0 %v24, 15
    %v176 = vpop.permute.xlu0 %175
    %177 = vrot.lane.b32.xlu0 %v25, 15
    %v178 = vpop.permute.xlu0 %177
    %179 = vrot.lane.b32.xlu0 %v26, 15
    %v180 = vpop.permute.xlu0 %179
    %vm181 = vcmp.lt.s32.totalorder %v57, 15
    %v182 = vsel %vm181, %v178, %v180
    %v183 = vsel %vm181, %v176, %v178
    %v184 = vsel %vm181, %v174, %v176
    %v185 = vsel %vm181, %v172, %v174
    %v186 = vsel %vm181, %v170, %v172
    %v187 = vsel %vm181, %v168, %v170
    %v188 = vsel %vm181, %v166, %v168
    %v189 = vsel %vm181, %v180, %v166
    %s190 = scalar_lea.vmem %s1, 2
    %v191 = vld [vmem:[%s190] ss:$8 sm:$0xf]
    %v192 = vld [vmem:[%s190] ss:$8 sm:$0xf0]
    %v193 = vor.u32 %v191, %v192
    %v195 = vperm.slane %v193, 0
    %v196 = vperm.slane %v193, 1
    %v197 = vperm.slane %v193, 2
    %v198 = vperm.slane %v193, 3
    %v199 = vperm.slane %v193, 4
    %v200 = vperm.slane %v193, 5
    %v201 = vperm.slane %v193, 6
    %v202 = vperm.slane %v193, 7
    %v211 = vmul.f32 %v189, %v195
    %v212 = vmul.f32 %v188, %v196
    %v213 = vmul.f32 %v187, %v197
    %v214 = vmul.f32 %v186, %v198
    %v215 = vmul.f32 %v185, %v199
    %v216 = vmul.f32 %v184, %v200
    %v217 = vmul.f32 %v183, %v201
    %v218 = vmul.f32 %v182, %v202
    %219 = vst [vmem:[#allocation2 + $0x80] sm:$0xff] %v211
    %220 = vst [vmem:[#allocation2 + $0x88] sm:$0xff] %v212
    %221 = vst [vmem:[#allocation2 + $0x90] sm:$0xff] %v213
    %222 = vst [vmem:[#allocation2 + $0x98] sm:$0xff] %v214
    %223 = vst [vmem:[#allocation2 + $0xa0] sm:$0xff] %v215
    %224 = vst [vmem:[#allocation2 + $0xa8] sm:$0xff] %v216
    %225 = vst [vmem:[#allocation2 + $0xb0] sm:$0xff] %v217
    %226 = vst [vmem:[#allocation2 + $0xb8] sm:$0xff] %v218
    %227 = vrot.lane.b32.xlu0 %v19, 1
    %v228 = vpop.permute.xlu0 %227
    %229 = vrot.lane.b32.xlu0 %v20, 1
    %v230 = vpop.permute.xlu0 %229
    %231 = vrot.lane.b32.xlu0 %v21, 1
    %v232 = vpop.permute.xlu0 %231
    %233 = vrot.lane.b32.xlu0 %v22, 1
    %v234 = vpop.permute.xlu0 %233
    %235 = vrot.lane.b32.xlu0 %v23, 1
    %v236 = vpop.permute.xlu0 %235
    %237 = vrot.lane.b32.xlu0 %v24, 1
    %v238 = vpop.permute.xlu0 %237
    %239 = vrot.lane.b32.xlu0 %v25, 1
    %v240 = vpop.permute.xlu0 %239
    %241 = vrot.lane.b32.xlu0 %v26, 1
    %v242 = vpop.permute.xlu0 %241
    %vm243 = vcmp.lt.s32.totalorder %v57, 1
    %v244 = vsel %vm243, %v240, %v242
    %v245 = vsel %vm243, %v238, %v240
    %v246 = vsel %vm243, %v236, %v238
    %v247 = vsel %vm243, %v234, %v236
    %v248 = vsel %vm243, %v232, %v234
    %v249 = vsel %vm243, %v230, %v232
    %v250 = vsel %vm243, %v228, %v230
    %v251 = vsel %vm243, %v242, %v228
    %s252 = scalar_lea.vmem %s1, 3
    %v253 = vld [vmem:[%s252] ss:$8 sm:$0xf]
    %v254 = vld [vmem:[%s252] ss:$8 sm:$0xf0]
    %v255 = vor.u32 %v253, %v254
    %v257 = vperm.slane %v255, 0
    %v258 = vperm.slane %v255, 1
    %v259 = vperm.slane %v255, 2
    %v260 = vperm.slane %v255, 3
    %v261 = vperm.slane %v255, 4
    %v262 = vperm.slane %v255, 5
    %v263 = vperm.slane %v255, 6
    %v264 = vperm.slane %v255, 7
    %v273 = vmul.f32 %v251, %v257
    %v274 = vmul.f32 %v250, %v258
    %v275 = vmul.f32 %v249, %v259
    %v276 = vmul.f32 %v248, %v260
    %v277 = vmul.f32 %v247, %v261
    %v278 = vmul.f32 %v246, %v262
    %v279 = vmul.f32 %v245, %v263
    %v280 = vmul.f32 %v244, %v264
    %281 = vst [vmem:[#allocation2 + $0xc0] sm:$0xff] %v273
    %282 = vst [vmem:[#allocation2 + $0xc8] sm:$0xff] %v274
    %283 = vst [vmem:[#allocation2 + $0xd0] sm:$0xff] %v275
    %284 = vst [vmem:[#allocation2 + $0xd8] sm:$0xff] %v276
    %285 = vst [vmem:[#allocation2 + $0xe0] sm:$0xff] %v277
    %286 = vst [vmem:[#allocation2 + $0xe8] sm:$0xff] %v278
    %287 = vst [vmem:[#allocation2 + $0xf0] sm:$0xff] %v279
    %288 = vst [vmem:[#allocation2 + $0xf8] sm:$0xff] %v280
    %289 = vst [vmem:[#allocation2 + $0x100] sm:$0xff] %v19
    %290 = vst [vmem:[#allocation2 + $0x108] sm:$0xff] %v20
    %291 = vst [vmem:[#allocation2 + $0x110] sm:$0xff] %v21
    %292 = vst [vmem:[#allocation2 + $0x118] sm:$0xff] %v22
    %293 = vst [vmem:[#allocation2 + $0x120] sm:$0xff] %v23
    %294 = vst [vmem:[#allocation2 + $0x128] sm:$0xff] %v24
    %295 = vst [vmem:[#allocation2 + $0x130] sm:$0xff] %v25
    %296 = vst [vmem:[#allocation2 + $0x138] sm:$0xff] %v26
    %297 = vrot.lane.b32.xlu0 %v19, 127
    %v298 = vpop.permute.xlu0 %297
    %299 = vrot.lane.b32.xlu0 %v20, 127
    %v300 = vpop.permute.xlu0 %299
    %301 = vrot.lane.b32.xlu0 %v21, 127
    %v302 = vpop.permute.xlu0 %301
    %303 = vrot.lane.b32.xlu0 %v22, 127
    %v304 = vpop.permute.xlu0 %303
    %305 = vrot.lane.b32.xlu0 %v23, 127
    %v306 = vpop.permute.xlu0 %305
    %307 = vrot.lane.b32.xlu0 %v24, 127
    %v308 = vpop.permute.xlu0 %307
    %309 = vrot.lane.b32.xlu0 %v25, 127
    %v310 = vpop.permute.xlu0 %309
    %311 = vrot.lane.b32.xlu0 %v26, 127
    %v312 = vpop.permute.xlu0 %311
    %vm313 = vcmp.lt.s32.totalorder %v57, 127
    %v314 = vsel %vm313, %v310, %v312
    %v315 = vsel %vm313, %v308, %v310
    %v316 = vsel %vm313, %v306, %v308
    %v317 = vsel %vm313, %v304, %v306
    %v318 = vsel %vm313, %v302, %v304
    %v319 = vsel %vm313, %v300, %v302
    %v320 = vsel %vm313, %v298, %v300
    %v321 = vsel %vm313, %v312, %v298
    %s322 = scalar_lea.vmem %s1, 5
    %v323 = vld [vmem:[%s322] ss:$8 sm:$0xf]
    %v324 = vld [vmem:[%s322] ss:$8 sm:$0xf0]
    %v325 = vor.u32 %v323, %v324
    %v327 = vperm.slane %v325, 0
    %v328 = vperm.slane %v325, 1
    %v329 = vperm.slane %v325, 2
    %v330 = vperm.slane %v325, 3
    %v331 = vperm.slane %v325, 4
    %v332 = vperm.slane %v325, 5
    %v333 = vperm.slane %v325, 6
    %v334 = vperm.slane %v325, 7
    %v343 = vmul.f32 %v320, %v327
    %v344 = vmul.f32 %v319, %v328
    %v345 = vmul.f32 %v318, %v329
    %v346 = vmul.f32 %v317, %v330
    %v347 = vmul.f32 %v316, %v331
    %v348 = vmul.f32 %v315, %v332
    %v349 = vmul.f32 %v314, %v333
    %v350 = vmul.f32 %v321, %v334
    %351 = vst [vmem:[#allocation2 + $0x140] sm:$0xff] %v343
    %352 = vst [vmem:[#allocation2 + $0x148] sm:$0xff] %v344
    %353 = vst [vmem:[#allocation2 + $0x150] sm:$0xff] %v345
    %354 = vst [vmem:[#allocation2 + $0x158] sm:$0xff] %v346
    %355 = vst [vmem:[#allocation2 + $0x160] sm:$0xff] %v347
    %356 = vst [vmem:[#allocation2 + $0x168] sm:$0xff] %v348
    %357 = vst [vmem:[#allocation2 + $0x170] sm:$0xff] %v349
    %358 = vst [vmem:[#allocation2 + $0x178] sm:$0xff] %v350
    %359 = vrot.lane.b32.xlu0 %v19, 113
    %v360 = vpop.permute.xlu0 %359
    %361 = vrot.lane.b32.xlu0 %v20, 113
    %v362 = vpop.permute.xlu0 %361
    %363 = vrot.lane.b32.xlu0 %v21, 113
    %v364 = vpop.permute.xlu0 %363
    %365 = vrot.lane.b32.xlu0 %v22, 113
    %v366 = vpop.permute.xlu0 %365
    %367 = vrot.lane.b32.xlu0 %v23, 113
    %v368 = vpop.permute.xlu0 %367
    %369 = vrot.lane.b32.xlu0 %v24, 113
    %v370 = vpop.permute.xlu0 %369
    %371 = vrot.lane.b32.xlu0 %v25, 113
    %v372 = vpop.permute.xlu0 %371
    %373 = vrot.lane.b32.xlu0 %v26, 113
    %v374 = vpop.permute.xlu0 %373
    %vm375 = vcmp.lt.s32.totalorder %v57, 113
    %v376 = vsel %vm375, %v372, %v374
    %v377 = vsel %vm375, %v370, %v372
    %v378 = vsel %vm375, %v368, %v370
    %v379 = vsel %vm375, %v366, %v368
    %v380 = vsel %vm375, %v364, %v366
    %v381 = vsel %vm375, %v362, %v364
    %v382 = vsel %vm375, %v360, %v362
    %v383 = vsel %vm375, %v374, %v360
    %s384 = scalar_lea.vmem %s1, 6
    %v385 = vld [vmem:[%s384] ss:$8 sm:$0xf]
    %v386 = vld [vmem:[%s384] ss:$8 sm:$0xf0]
    %v387 = vor.u32 %v385, %v386
    %v389 = vperm.slane %v387, 0
    %v390 = vperm.slane %v387, 1
    %v391 = vperm.slane %v387, 2
    %v392 = vperm.slane %v387, 3
    %v393 = vperm.slane %v387, 4
    %v394 = vperm.slane %v387, 5
    %v395 = vperm.slane %v387, 6
    %v396 = vperm.slane %v387, 7
    %v405 = vmul.f32 %v382, %v389
    %v406 = vmul.f32 %v381, %v390
    %v407 = vmul.f32 %v380, %v391
    %v408 = vmul.f32 %v379, %v392
    %v409 = vmul.f32 %v378, %v393
    %v410 = vmul.f32 %v377, %v394
    %v411 = vmul.f32 %v376, %v395
    %v412 = vmul.f32 %v383, %v396
    %413 = vst [vmem:[#allocation2 + $0x180] sm:$0xff] %v405
    %414 = vst [vmem:[#allocation2 + $0x188] sm:$0xff] %v406
    %415 = vst [vmem:[#allocation2 + $0x190] sm:$0xff] %v407
    %416 = vst [vmem:[#allocation2 + $0x198] sm:$0xff] %v408
    %417 = vst [vmem:[#allocation2 + $0x1a0] sm:$0xff] %v409
    %418 = vst [vmem:[#allocation2 + $0x1a8] sm:$0xff] %v410
    %419 = vst [vmem:[#allocation2 + $0x1b0] sm:$0xff] %v411
    %420 = vst [vmem:[#allocation2 + $0x1b8] sm:$0xff] %v412
    %421 = vrot.lane.b32.xlu0 %v19, 112
    %v422 = vpop.permute.xlu0 %421
    %423 = vrot.lane.b32.xlu0 %v20, 112
    %v424 = vpop.permute.xlu0 %423
    %425 = vrot.lane.b32.xlu0 %v21, 112
    %v426 = vpop.permute.xlu0 %425
    %427 = vrot.lane.b32.xlu0 %v22, 112
    %v428 = vpop.permute.xlu0 %427
    %429 = vrot.lane.b32.xlu0 %v23, 112
    %v430 = vpop.permute.xlu0 %429
    %431 = vrot.lane.b32.xlu0 %v24, 112
    %v432 = vpop.permute.xlu0 %431
    %433 = vrot.lane.b32.xlu0 %v25, 112
    %v434 = vpop.permute.xlu0 %433
    %435 = vrot.lane.b32.xlu0 %v26, 112
    %v436 = vpop.permute.xlu0 %435
    %vm437 = vcmp.lt.s32.totalorder %v57, 112
    %v438 = vsel %vm437, %v434, %v436
    %v439 = vsel %vm437, %v432, %v434
    %v440 = vsel %vm437, %v430, %v432
    %v441 = vsel %vm437, %v428, %v430
    %v442 = vsel %vm437, %v426, %v428
    %v443 = vsel %vm437, %v424, %v426
    %v444 = vsel %vm437, %v422, %v424
    %v445 = vsel %vm437, %v436, %v422
    %s446 = scalar_lea.vmem %s1, 7
    %v447 = vld [vmem:[%s446] ss:$8 sm:$0xf]
    %v448 = vld [vmem:[%s446] ss:$8 sm:$0xf0]
    %v449 = vor.u32 %v447, %v448
    %v451 = vperm.slane %v449, 0
    %v452 = vperm.slane %v449, 1
    %v453 = vperm.slane %v449, 2
    %v454 = vperm.slane %v449, 3
    %v455 = vperm.slane %v449, 4
    %v456 = vperm.slane %v449, 5
    %v457 = vperm.slane %v449, 6
    %v458 = vperm.slane %v449, 7
    %v467 = vmul.f32 %v444, %v451
    %v468 = vmul.f32 %v443, %v452
    %v469 = vmul.f32 %v442, %v453
    %v470 = vmul.f32 %v441, %v454
    %v471 = vmul.f32 %v440, %v455
    %v472 = vmul.f32 %v439, %v456
    %v473 = vmul.f32 %v438, %v457
    %v474 = vmul.f32 %v445, %v458
    %475 = vst [vmem:[#allocation2 + $0x1c0] sm:$0xff] %v467
    %476 = vst [vmem:[#allocation2 + $0x1c8] sm:$0xff] %v468
    %477 = vst [vmem:[#allocation2 + $0x1d0] sm:$0xff] %v469
    %478 = vst [vmem:[#allocation2 + $0x1d8] sm:$0xff] %v470
    %479 = vst [vmem:[#allocation2 + $0x1e0] sm:$0xff] %v471
    %480 = vst [vmem:[#allocation2 + $0x1e8] sm:$0xff] %v472
    %481 = vst [vmem:[#allocation2 + $0x1f0] sm:$0xff] %v473
    %482 = vst [vmem:[#allocation2 + $0x1f8] sm:$0xff] %v474
    %483 = vrot.lane.b32.xlu0 %v19, 111
    %v484 = vpop.permute.xlu0 %483
    %485 = vrot.lane.b32.xlu0 %v20, 111
    %v486 = vpop.permute.xlu0 %485
    %487 = vrot.lane.b32.xlu0 %v21, 111
    %v488 = vpop.permute.xlu0 %487
    %489 = vrot.lane.b32.xlu0 %v22, 111
    %v490 = vpop.permute.xlu0 %489
    %491 = vrot.lane.b32.xlu0 %v23, 111
    %v492 = vpop.permute.xlu0 %491
    %493 = vrot.lane.b32.xlu0 %v24, 111
    %v494 = vpop.permute.xlu0 %493
    %495 = vrot.lane.b32.xlu0 %v25, 111
    %v496 = vpop.permute.xlu0 %495
    %497 = vrot.lane.b32.xlu0 %v26, 111
    %v498 = vpop.permute.xlu0 %497
    %vm499 = vcmp.lt.s32.totalorder %v57, 111
    %v500 = vsel %vm499, %v496, %v498
    %v501 = vsel %vm499, %v494, %v496
    %v502 = vsel %vm499, %v492, %v494
    %v503 = vsel %vm499, %v490, %v492
    %v504 = vsel %vm499, %v488, %v490
    %v505 = vsel %vm499, %v486, %v488
    %v506 = vsel %vm499, %v484, %v486
    %v507 = vsel %vm499, %v498, %v484
    %s508 = scalar_lea.vmem %s1, 64
    %v509 = vld [vmem:[%s508] ss:$8 sm:$0xf]
    %v510 = vld [vmem:[%s508] ss:$8 sm:$0xf0]
    %v511 = vor.u32 %v509, %v510
    %v513 = vperm.slane %v511, 0
    %v514 = vperm.slane %v511, 1
    %v515 = vperm.slane %v511, 2
    %v516 = vperm.slane %v511, 3
    %v517 = vperm.slane %v511, 4
    %v518 = vperm.slane %v511, 5
    %v519 = vperm.slane %v511, 6
    %v520 = vperm.slane %v511, 7
    %v529 = vmul.f32 %v506, %v513
    %v530 = vmul.f32 %v505, %v514
    %v531 = vmul.f32 %v504, %v515
    %v532 = vmul.f32 %v503, %v516
    %v533 = vmul.f32 %v502, %v517
    %v534 = vmul.f32 %v501, %v518
    %v535 = vmul.f32 %v500, %v519
    %v536 = vmul.f32 %v507, %v520
    %537 = vst [vmem:[#allocation2 + $0x200] sm:$0xff] %v529
    %538 = vst [vmem:[#allocation2 + $0x208] sm:$0xff] %v530
    %539 = vst [vmem:[#allocation2 + $0x210] sm:$0xff] %v531
    %540 = vst [vmem:[#allocation2 + $0x218] sm:$0xff] %v532
    %541 = vst [vmem:[#allocation2 + $0x220] sm:$0xff] %v533
    %542 = vst [vmem:[#allocation2 + $0x228] sm:$0xff] %v534
    %543 = vst [vmem:[#allocation2 + $0x230] sm:$0xff] %v535
    %544 = vst [vmem:[#allocation2 + $0x238] sm:$0xff] %v536
    %v545 = vld [vmem:[%s2] sm:$0xff]
    %v546 = vld [vmem:[#allocation2] sm:$0xff]
    %v547 = vld [vmem:[#allocation2 + $0x8] sm:$0xff]
    %v548 = vld [vmem:[#allocation2 + $0x10] sm:$0xff]
    %v549 = vld [vmem:[#allocation2 + $0x18] sm:$0xff]
    %v550 = vld [vmem:[#allocation2 + $0x20] sm:$0xff]
    %v551 = vld [vmem:[#allocation2 + $0x28] sm:$0xff]
    %v552 = vld [vmem:[#allocation2 + $0x30] sm:$0xff]
    %v553 = vld [vmem:[#allocation2 + $0x38] sm:$0xff]
    %v554 = vld [vmem:[#allocation2 + $0x40] sm:$0xff]
    %v555 = vld [vmem:[#allocation2 + $0x48] sm:$0xff]
    %v556 = vld [vmem:[#allocation2 + $0x50] sm:$0xff]
    %v557 = vld [vmem:[#allocation2 + $0x58] sm:$0xff]
    %v558 = vld [vmem:[#allocation2 + $0x60] sm:$0xff]
    %v559 = vld [vmem:[#allocation2 + $0x68] sm:$0xff]
    %v560 = vld [vmem:[#allocation2 + $0x70] sm:$0xff]
    %v561 = vld [vmem:[#allocation2 + $0x78] sm:$0xff]
    %v562 = vld [vmem:[#allocation2 + $0x80] sm:$0xff]
    %v563 = vld [vmem:[#allocation2 + $0x88] sm:$0xff]
    %v564 = vld [vmem:[#allocation2 + $0x90] sm:$0xff]
    %v565 = vld [vmem:[#allocation2 + $0x98] sm:$0xff]
    %v566 = vld [vmem:[#allocation2 + $0xa0] sm:$0xff]
    %v567 = vld [vmem:[#allocation2 + $0xa8] sm:$0xff]
    %v568 = vld [vmem:[#allocation2 + $0xb0] sm:$0xff]
    %v569 = vld [vmem:[#allocation2 + $0xb8] sm:$0xff]
    %v570 = vld [vmem:[#allocation2 + $0xc0] sm:$0xff]
    %v571 = vld [vmem:[#allocation2 + $0xc8] sm:$0xff]
    %v572 = vld [vmem:[#allocation2 + $0xd0] sm:$0xff]
    %v573 = vld [vmem:[#allocation2 + $0xd8] sm:$0xff]
    %v574 = vld [vmem:[#allocation2 + $0xe0] sm:$0xff]
    %v575 = vld [vmem:[#allocation2 + $0xe8] sm:$0xff]
    %v576 = vld [vmem:[#allocation2 + $0xf0] sm:$0xff]
    %v577 = vld [vmem:[#allocation2 + $0xf8] sm:$0xff]
    %v578 = vld [vmem:[#allocation2 + $0x100] sm:$0xff]
    %v579 = vld [vmem:[#allocation2 + $0x108] sm:$0xff]
    %v580 = vld [vmem:[#allocation2 + $0x110] sm:$0xff]
    %v581 = vld [vmem:[#allocation2 + $0x118] sm:$0xff]
    %v582 = vld [vmem:[#allocation2 + $0x120] sm:$0xff]
    %v583 = vld [vmem:[#allocation2 + $0x128] sm:$0xff]
    %v584 = vld [vmem:[#allocation2 + $0x130] sm:$0xff]
    %v585 = vld [vmem:[#allocation2 + $0x138] sm:$0xff]
    %v586 = vld [vmem:[#allocation2 + $0x140] sm:$0xff]
    %v587 = vld [vmem:[#allocation2 + $0x148] sm:$0xff]
    %v588 = vld [vmem:[#allocation2 + $0x150] sm:$0xff]
    %v589 = vld [vmem:[#allocation2 + $0x158] sm:$0xff]
    %v590 = vld [vmem:[#allocation2 + $0x160] sm:$0xff]
    %v591 = vld [vmem:[#allocation2 + $0x168] sm:$0xff]
    %v592 = vld [vmem:[#allocation2 + $0x170] sm:$0xff]
    %v593 = vld [vmem:[#allocation2 + $0x178] sm:$0xff]
    %v594 = vld [vmem:[#allocation2 + $0x180] sm:$0xff]
    %v595 = vld [vmem:[#allocation2 + $0x188] sm:$0xff]
    %v596 = vld [vmem:[#allocation2 + $0x190] sm:$0xff]
    %v597 = vld [vmem:[#allocation2 + $0x198] sm:$0xff]
    %v598 = vld [vmem:[#allocation2 + $0x1a0] sm:$0xff]
    %v599 = vld [vmem:[#allocation2 + $0x1a8] sm:$0xff]
    %v600 = vld [vmem:[#allocation2 + $0x1b0] sm:$0xff]
    %v601 = vld [vmem:[#allocation2 + $0x1b8] sm:$0xff]
    %v602 = vld [vmem:[#allocation2 + $0x1c0] sm:$0xff]
    %v603 = vld [vmem:[#allocation2 + $0x1c8] sm:$0xff]
    %v604 = vld [vmem:[#allocation2 + $0x1d0] sm:$0xff]
    %v605 = vld [vmem:[#allocation2 + $0x1d8] sm:$0xff]
    %v606 = vld [vmem:[#allocation2 + $0x1e0] sm:$0xff]
    %v607 = vld [vmem:[#allocation2 + $0x1e8] sm:$0xff]
    %v608 = vld [vmem:[#allocation2 + $0x1f0] sm:$0xff]
    %v609 = vld [vmem:[#allocation2 + $0x1f8] sm:$0xff]
    %v610 = vld [vmem:[#allocation2 + $0x200] sm:$0xff]
    %v611 = vld [vmem:[#allocation2 + $0x208] sm:$0xff]
    %v612 = vld [vmem:[#allocation2 + $0x210] sm:$0xff]
    %v613 = vld [vmem:[#allocation2 + $0x218] sm:$0xff]
    %v614 = vld [vmem:[#allocation2 + $0x220] sm:$0xff]
    %v615 = vld [vmem:[#allocation2 + $0x228] sm:$0xff]
    %v616 = vld [vmem:[#allocation2 + $0x230] sm:$0xff]
    %v617 = vld [vmem:[#allocation2 + $0x238] sm:$0xff]
    %v618 = vld [vmem:[#allocation2 + $0x240] sm:$0xff]
    %v619 = vld [vmem:[#allocation2 + $0x248] sm:$0xff]
    %v620 = vld [vmem:[#allocation2 + $0x250] sm:$0xff]
    %v621 = vld [vmem:[#allocation2 + $0x258] sm:$0xff]
    %v622 = vld [vmem:[#allocation2 + $0x260] sm:$0xff]
    %v623 = vld [vmem:[#allocation2 + $0x268] sm:$0xff]
    %v624 = vld [vmem:[#allocation2 + $0x270] sm:$0xff]
    %v625 = vld [vmem:[#allocation2 + $0x278] sm:$0xff]
    %vm626 = vcmask 654336
    %v628 = vsel %vm626, %v545, 0
    %630 = vmatpush.msra.mxu0 0.0
    %631 = vmatpush.msra.mxu0 0.0
    %632 = vmatpush.msra.mxu0 0.0
    %633 = vmatpush.msra.mxu0 0.0
    %634 = vmatpush.msra.mxu0 0.0
    %635 = vmatpush.msra.mxu0 0.0
    %636 = vmatpush.msra.mxu0 %v618
    %637 = vmatpush.msra.mxu0 %v610
    %638 = vmatpush.msra.mxu0 %v602
    %639 = vmatpush.msra.mxu0 %v594
    %640 = vmatpush.msra.mxu0 %v586
    %641 = vmatpush.msra.mxu0 %v578
    %642 = vmatpush.msra.mxu0 %v570
    %643 = vmatpush.msra.mxu0 %v562
    %644 = vmatpush.msra.mxu0 %v554
    %645 = vmatpush.msra.mxu0 %v546
    %646 = vmatmul.f32.gmra.mxu0 %v628
    %v647 = vpop.f32.mrf.mxu0
    %v648 = vadd.f32 0.0, %v647
    %649 = vdwg.mxu0
    %650 = vmatpush.msra.mxu0 0.0
    %651 = vmatpush.msra.mxu0 0.0
    %652 = vmatpush.msra.mxu0 0.0
    %653 = vmatpush.msra.mxu0 0.0
    %654 = vmatpush.msra.mxu0 0.0
    %655 = vmatpush.msra.mxu0 0.0
    %656 = vmatpush.msra.mxu0 %v619
    %657 = vmatpush.msra.mxu0 %v611
    %658 = vmatpush.msra.mxu0 %v603
    %659 = vmatpush.msra.mxu0 %v595
    %660 = vmatpush.msra.mxu0 %v587
    %661 = vmatpush.msra.mxu0 %v579
    %662 = vmatpush.msra.mxu0 %v571
    %663 = vmatpush.msra.mxu0 %v563
    %664 = vmatpush.msra.mxu0 %v555
    %665 = vmatpush.msra.mxu0 %v547
    %666 = vmatmul.f32.gmra.mxu0 %v628
    %v667 = vpop.f32.mrf.mxu0
    %v668 = vadd.f32 0.0, %v667
    %669 = vdwg.mxu0
    %670 = vmatpush.msra.mxu0 0.0
    %671 = vmatpush.msra.mxu0 0.0
    %672 = vmatpush.msra.mxu0 0.0
    %673 = vmatpush.msra.mxu0 0.0
    %674 = vmatpush.msra.mxu0 0.0
    %675 = vmatpush.msra.mxu0 0.0
    %676 = vmatpush.msra.mxu0 %v620
    %677 = vmatpush.msra.mxu0 %v612
    %678 = vmatpush.msra.mxu0 %v604
    %679 = vmatpush.msra.mxu0 %v596
    %680 = vmatpush.msra.mxu0 %v588
    %681 = vmatpush.msra.mxu0 %v580
    %682 = vmatpush.msra.mxu0 %v572
    %683 = vmatpush.msra.mxu0 %v564
    %684 = vmatpush.msra.mxu0 %v556
    %685 = vmatpush.msra.mxu0 %v548
    %686 = vmatmul.f32.gmra.mxu0 %v628
    %v687 = vpop.f32.mrf.mxu0
    %v688 = vadd.f32 0.0, %v687
    %689 = vdwg.mxu0
    %690 = vmatpush.msra.mxu0 0.0
    %691 = vmatpush.msra.mxu0 0.0
    %692 = vmatpush.msra.mxu0 0.0
    %693 = vmatpush.msra.mxu0 0.0
    %694 = vmatpush.msra.mxu0 0.0
    %695 = vmatpush.msra.mxu0 0.0
    %696 = vmatpush.msra.mxu0 %v621
    %697 = vmatpush.msra.mxu0 %v613
    %698 = vmatpush.msra.mxu0 %v605
    %699 = vmatpush.msra.mxu0 %v597
    %700 = vmatpush.msra.mxu0 %v589
    %701 = vmatpush.msra.mxu0 %v581
    %702 = vmatpush.msra.mxu0 %v573
    %703 = vmatpush.msra.mxu0 %v565
    %704 = vmatpush.msra.mxu0 %v557
    %705 = vmatpush.msra.mxu0 %v549
    %706 = vmatmul.f32.gmra.mxu0 %v628
    %v707 = vpop.f32.mrf.mxu0
    %v708 = vadd.f32 0.0, %v707
    %709 = vdwg.mxu0
    %710 = vmatpush.msra.mxu0 0.0
    %711 = vmatpush.msra.mxu0 0.0
    %712 = vmatpush.msra.mxu0 0.0
    %713 = vmatpush.msra.mxu0 0.0
    %714 = vmatpush.msra.mxu0 0.0
    %715 = vmatpush.msra.mxu0 0.0
    %716 = vmatpush.msra.mxu0 %v622
    %717 = vmatpush.msra.mxu0 %v614
    %718 = vmatpush.msra.mxu0 %v606
    %719 = vmatpush.msra.mxu0 %v598
    %720 = vmatpush.msra.mxu0 %v590
    %721 = vmatpush.msra.mxu0 %v582
    %722 = vmatpush.msra.mxu0 %v574
    %723 = vmatpush.msra.mxu0 %v566
    %724 = vmatpush.msra.mxu0 %v558
    %725 = vmatpush.msra.mxu0 %v550
    %726 = vmatmul.f32.gmra.mxu0 %v628
    %v727 = vpop.f32.mrf.mxu0
    %v728 = vadd.f32 0.0, %v727
    %729 = vdwg.mxu0
    %730 = vmatpush.msra.mxu0 0.0
    %731 = vmatpush.msra.mxu0 0.0
    %732 = vmatpush.msra.mxu0 0.0
    %733 = vmatpush.msra.mxu0 0.0
    %734 = vmatpush.msra.mxu0 0.0
    %735 = vmatpush.msra.mxu0 0.0
    %736 = vmatpush.msra.mxu0 %v623
    %737 = vmatpush.msra.mxu0 %v615
    %738 = vmatpush.msra.mxu0 %v607
    %739 = vmatpush.msra.mxu0 %v599
    %740 = vmatpush.msra.mxu0 %v591
    %741 = vmatpush.msra.mxu0 %v583
    %742 = vmatpush.msra.mxu0 %v575
    %743 = vmatpush.msra.mxu0 %v567
    %744 = vmatpush.msra.mxu0 %v559
    %745 = vmatpush.msra.mxu0 %v551
    %746 = vmatmul.f32.gmra.mxu0 %v628
    %v747 = vpop.f32.mrf.mxu0
    %v748 = vadd.f32 0.0, %v747
    %749 = vdwg.mxu0
    %750 = vmatpush.msra.mxu0 0.0
    %751 = vmatpush.msra.mxu0 0.0
    %752 = vmatpush.msra.mxu0 0.0
    %753 = vmatpush.msra.mxu0 0.0
    %754 = vmatpush.msra.mxu0 0.0
    %755 = vmatpush.msra.mxu0 0.0
    %756 = vmatpush.msra.mxu0 %v624
    %757 = vmatpush.msra.mxu0 %v616
    %758 = vmatpush.msra.mxu0 %v608
    %759 = vmatpush.msra.mxu0 %v600
    %760 = vmatpush.msra.mxu0 %v592
    %761 = vmatpush.msra.mxu0 %v584
    %762 = vmatpush.msra.mxu0 %v576
    %763 = vmatpush.msra.mxu0 %v568
    %764 = vmatpush.msra.mxu0 %v560
    %765 = vmatpush.msra.mxu0 %v552
    %766 = vmatmul.f32.gmra.mxu0 %v628
    %v767 = vpop.f32.mrf.mxu0
    %v768 = vadd.f32 0.0, %v767
    %769 = vdwg.mxu0
    %770 = vmatpush.msra.mxu0 0.0
    %771 = vmatpush.msra.mxu0 0.0
    %772 = vmatpush.msra.mxu0 0.0
    %773 = vmatpush.msra.mxu0 0.0
    %774 = vmatpush.msra.mxu0 0.0
    %775 = vmatpush.msra.mxu0 0.0
    %776 = vmatpush.msra.mxu0 %v625
    %777 = vmatpush.msra.mxu0 %v617
    %778 = vmatpush.msra.mxu0 %v609
    %779 = vmatpush.msra.mxu0 %v601
    %780 = vmatpush.msra.mxu0 %v593
    %781 = vmatpush.msra.mxu0 %v585
    %782 = vmatpush.msra.mxu0 %v577
    %783 = vmatpush.msra.mxu0 %v569
    %784 = vmatpush.msra.mxu0 %v561
    %785 = vmatpush.msra.mxu0 %v553
    %786 = vmatmul.f32.gmra.mxu0 %v628
    %v787 = vpop.f32.mrf.mxu0
    %v788 = vadd.f32 0.0, %v787
    %789 = vdwg.mxu0
    %v790 = vmax.f32 %v648, 0.0
    %v791 = vmax.f32 %v668, 0.0
    %v792 = vmax.f32 %v688, 0.0
    %v793 = vmax.f32 %v708, 0.0
    %v794 = vmax.f32 %v728, 0.0
    %v795 = vmax.f32 %v748, 0.0
    %v796 = vmax.f32 %v768, 0.0
    %v797 = vmax.f32 %v788, 0.0
    %798 = vrot.lane.b32.xlu0 %v790, 17
    %v799 = vpop.permute.xlu0 %798
    %800 = vrot.lane.b32.xlu0 %v791, 17
    %v801 = vpop.permute.xlu0 %800
    %802 = vrot.lane.b32.xlu0 %v792, 17
    %v803 = vpop.permute.xlu0 %802
    %804 = vrot.lane.b32.xlu0 %v793, 17
    %v805 = vpop.permute.xlu0 %804
    %806 = vrot.lane.b32.xlu0 %v794, 17
    %v807 = vpop.permute.xlu0 %806
    %808 = vrot.lane.b32.xlu0 %v795, 17
    %v809 = vpop.permute.xlu0 %808
    %810 = vrot.lane.b32.xlu0 %v796, 17
    %v811 = vpop.permute.xlu0 %810
    %812 = vrot.lane.b32.xlu0 %v797, 17
    %v813 = vpop.permute.xlu0 %812
    %v814 = vsel %vm58, %v811, %v813
    %v815 = vsel %vm58, %v809, %v811
    %v816 = vsel %vm58, %v807, %v809
    %v817 = vsel %vm58, %v805, %v807
    %v818 = vsel %vm58, %v803, %v805
    %v819 = vsel %vm58, %v801, %v803
    %v820 = vsel %vm58, %v799, %v801
    %v821 = vsel %vm58, %v813, %v799
    %v822 = vld [vmem:[%s1] ss:$8 sm:$0xf]
    %v823 = vld [vmem:[%s1] ss:$8 sm:$0xf0]
    %v824 = vor.u32 %v822, %v823
    %v826 = vperm.slane %v824, 0
    %v827 = vperm.slane %v824, 1
    %v828 = vperm.slane %v824, 2
    %v829 = vperm.slane %v824, 3
    %v830 = vperm.slane %v824, 4
    %v831 = vperm.slane %v824, 5
    %v832 = vperm.slane %v824, 6
    %v833 = vperm.slane %v824, 7
    %v842 = vmul.f32 %v821, %v826
    %v843 = vmul.f32 %v820, %v827
    %v844 = vmul.f32 %v819, %v828
    %v845 = vmul.f32 %v818, %v829
    %v846 = vmul.f32 %v817, %v830
    %v847 = vmul.f32 %v816, %v831
    %v848 = vmul.f32 %v815, %v832
    %v849 = vmul.f32 %v814, %v833
    %850 = vst [vmem:[#allocation2] sm:$0xff] %v842
    %851 = vst [vmem:[#allocation2 + $0x8] sm:$0xff] %v843
    %852 = vst [vmem:[#allocation2 + $0x10] sm:$0xff] %v844
    %853 = vst [vmem:[#allocation2 + $0x18] sm:$0xff] %v845
    %854 = vst [vmem:[#allocation2 + $0x20] sm:$0xff] %v846
    %855 = vst [vmem:[#allocation2 + $0x28] sm:$0xff] %v847
    %856 = vst [vmem:[#allocation2 + $0x30] sm:$0xff] %v848
    %857 = vst [vmem:[#allocation2 + $0x38] sm:$0xff] %v849
    %858 = vrot.lane.b32.xlu0 %v790, 16
    %v859 = vpop.permute.xlu0 %858
    %860 = vrot.lane.b32.xlu0 %v791, 16
    %v861 = vpop.permute.xlu0 %860
    %862 = vrot.lane.b32.xlu0 %v792, 16
    %v863 = vpop.permute.xlu0 %862
    %864 = vrot.lane.b32.xlu0 %v793, 16
    %v865 = vpop.permute.xlu0 %864
    %866 = vrot.lane.b32.xlu0 %v794, 16
    %v867 = vpop.permute.xlu0 %866
    %868 = vrot.lane.b32.xlu0 %v795, 16
    %v869 = vpop.permute.xlu0 %868
    %870 = vrot.lane.b32.xlu0 %v796, 16
    %v871 = vpop.permute.xlu0 %870
    %872 = vrot.lane.b32.xlu0 %v797, 16
    %v873 = vpop.permute.xlu0 %872
    %v874 = vsel %vm119, %v871, %v873
    %v875 = vsel %vm119, %v869, %v871
    %v876 = vsel %vm119, %v867, %v869
    %v877 = vsel %vm119, %v865, %v867
    %v878 = vsel %vm119, %v863, %v865
    %v879 = vsel %vm119, %v861, %v863
    %v880 = vsel %vm119, %v859, %v861
    %v881 = vsel %vm119, %v873, %v859
    %v882 = vld [vmem:[%s128] ss:$8 sm:$0xf]
    %v883 = vld [vmem:[%s128] ss:$8 sm:$0xf0]
    %v884 = vor.u32 %v882, %v883
    %v886 = vperm.slane %v884, 0
    %v887 = vperm.slane %v884, 1
    %v888 = vperm.slane %v884, 2
    %v889 = vperm.slane %v884, 3
    %v890 = vperm.slane %v884, 4
    %v891 = vperm.slane %v884, 5
    %v892 = vperm.slane %v884, 6
    %v893 = vperm.slane %v884, 7
    %v902 = vmul.f32 %v881, %v886
    %v903 = vmul.f32 %v880, %v887
    %v904 = vmul.f32 %v879, %v888
    %v905 = vmul.f32 %v878, %v889
    %v906 = vmul.f32 %v877, %v890
    %v907 = vmul.f32 %v876, %v891
    %v908 = vmul.f32 %v875, %v892
    %v909 = vmul.f32 %v874, %v893
    %910 = vst [vmem:[#allocation2 + $0x40] sm:$0xff] %v902
    %911 = vst [vmem:[#allocation2 + $0x48] sm:$0xff] %v903
    %912 = vst [vmem:[#allocation2 + $0x50] sm:$0xff] %v904
    %913 = vst [vmem:[#allocation2 + $0x58] sm:$0xff] %v905
    %914 = vst [vmem:[#allocation2 + $0x60] sm:$0xff] %v906
    %915 = vst [vmem:[#allocation2 + $0x68] sm:$0xff] %v907
    %916 = vst [vmem:[#allocation2 + $0x70] sm:$0xff] %v908
    %917 = vst [vmem:[#allocation2 + $0x78] sm:$0xff] %v909
    %918 = vrot.lane.b32.xlu0 %v790, 15
    %v919 = vpop.permute.xlu0 %918
    %920 = vrot.lane.b32.xlu0 %v791, 15
    %v921 = vpop.permute.xlu0 %920
    %922 = vrot.lane.b32.xlu0 %v792, 15
    %v923 = vpop.permute.xlu0 %922
    %924 = vrot.lane.b32.xlu0 %v793, 15
    %v925 = vpop.permute.xlu0 %924
    %926 = vrot.lane.b32.xlu0 %v794, 15
    %v927 = vpop.permute.xlu0 %926
    %928 = vrot.lane.b32.xlu0 %v795, 15
    %v929 = vpop.permute.xlu0 %928
    %930 = vrot.lane.b32.xlu0 %v796, 15
    %v931 = vpop.permute.xlu0 %930
    %932 = vrot.lane.b32.xlu0 %v797, 15
    %v933 = vpop.permute.xlu0 %932
    %v934 = vsel %vm181, %v931, %v933
    %v935 = vsel %vm181, %v929, %v931
    %v936 = vsel %vm181, %v927, %v929
    %v937 = vsel %vm181, %v925, %v927
    %v938 = vsel %vm181, %v923, %v925
    %v939 = vsel %vm181, %v921, %v923
    %v940 = vsel %vm181, %v919, %v921
    %v941 = vsel %vm181, %v933, %v919
    %v942 = vld [vmem:[%s190] ss:$8 sm:$0xf]
    %v943 = vld [vmem:[%s190] ss:$8 sm:$0xf0]
    %v944 = vor.u32 %v942, %v943
    %v946 = vperm.slane %v944, 0
    %v947 = vperm.slane %v944, 1
    %v948 = vperm.slane %v944, 2
    %v949 = vperm.slane %v944, 3
    %v950 = vperm.slane %v944, 4
    %v951 = vperm.slane %v944, 5
    %v952 = vperm.slane %v944, 6
    %v953 = vperm.slane %v944, 7
    %v962 = vmul.f32 %v941, %v946
    %v963 = vmul.f32 %v940, %v947
    %v964 = vmul.f32 %v939, %v948
    %v965 = vmul.f32 %v938, %v949
    %v966 = vmul.f32 %v937, %v950
    %v967 = vmul.f32 %v936, %v951
    %v968 = vmul.f32 %v935, %v952
    %v969 = vmul.f32 %v934, %v953
    %970 = vst [vmem:[#allocation2 + $0x80] sm:$0xff] %v962
    %971 = vst [vmem:[#allocation2 + $0x88] sm:$0xff] %v963
    %972 = vst [vmem:[#allocation2 + $0x90] sm:$0xff] %v964
    %973 = vst [vmem:[#allocation2 + $0x98] sm:$0xff] %v965
    %974 = vst [vmem:[#allocation2 + $0xa0] sm:$0xff] %v966
    %975 = vst [vmem:[#allocation2 + $0xa8] sm:$0xff] %v967
    %976 = vst [vmem:[#allocation2 + $0xb0] sm:$0xff] %v968
    %977 = vst [vmem:[#allocation2 + $0xb8] sm:$0xff] %v969
    %978 = vrot.lane.b32.xlu0 %v790, 1
    %v979 = vpop.permute.xlu0 %978
    %980 = vrot.lane.b32.xlu0 %v791, 1
    %v981 = vpop.permute.xlu0 %980
    %982 = vrot.lane.b32.xlu0 %v792, 1
    %v983 = vpop.permute.xlu0 %982
    %984 = vrot.lane.b32.xlu0 %v793, 1
    %v985 = vpop.permute.xlu0 %984
    %986 = vrot.lane.b32.xlu0 %v794, 1
    %v987 = vpop.permute.xlu0 %986
    %988 = vrot.lane.b32.xlu0 %v795, 1
    %v989 = vpop.permute.xlu0 %988
    %990 = vrot.lane.b32.xlu0 %v796, 1
    %v991 = vpop.permute.xlu0 %990
    %992 = vrot.lane.b32.xlu0 %v797, 1
    %v993 = vpop.permute.xlu0 %992
    %v994 = vsel %vm243, %v991, %v993
    %v995 = vsel %vm243, %v989, %v991
    %v996 = vsel %vm243, %v987, %v989
    %v997 = vsel %vm243, %v985, %v987
    %v998 = vsel %vm243, %v983, %v985
    %v999 = vsel %vm243, %v981, %v983
    %v1000 = vsel %vm243, %v979, %v981
    %v1001 = vsel %vm243, %v993, %v979
    %v1002 = vld [vmem:[%s252] ss:$8 sm:$0xf]
    %v1003 = vld [vmem:[%s252] ss:$8 sm:$0xf0]
    %v1004 = vor.u32 %v1002, %v1003
    %v1006 = vperm.slane %v1004, 0
    %v1007 = vperm.slane %v1004, 1
    %v1008 = vperm.slane %v1004, 2
    %v1009 = vperm.slane %v1004, 3
    %v1010 = vperm.slane %v1004, 4
    %v1011 = vperm.slane %v1004, 5
    %v1012 = vperm.slane %v1004, 6
    %v1013 = vperm.slane %v1004, 7
    %v1022 = vmul.f32 %v1001, %v1006
    %v1023 = vmul.f32 %v1000, %v1007
    %v1024 = vmul.f32 %v999, %v1008
    %v1025 = vmul.f32 %v998, %v1009
    %v1026 = vmul.f32 %v997, %v1010
    %v1027 = vmul.f32 %v996, %v1011
    %v1028 = vmul.f32 %v995, %v1012
    %v1029 = vmul.f32 %v994, %v1013
    %1030 = vst [vmem:[#allocation2 + $0xc0] sm:$0xff] %v1022
    %1031 = vst [vmem:[#allocation2 + $0xc8] sm:$0xff] %v1023
    %1032 = vst [vmem:[#allocation2 + $0xd0] sm:$0xff] %v1024
    %1033 = vst [vmem:[#allocation2 + $0xd8] sm:$0xff] %v1025
    %1034 = vst [vmem:[#allocation2 + $0xe0] sm:$0xff] %v1026
    %1035 = vst [vmem:[#allocation2 + $0xe8] sm:$0xff] %v1027
    %1036 = vst [vmem:[#allocation2 + $0xf0] sm:$0xff] %v1028
    %1037 = vst [vmem:[#allocation2 + $0xf8] sm:$0xff] %v1029
    %1038 = vst [vmem:[#allocation2 + $0x100] sm:$0xff] %v790
    %1039 = vst [vmem:[#allocation2 + $0x108] sm:$0xff] %v791
    %1040 = vst [vmem:[#allocation2 + $0x110] sm:$0xff] %v792
    %1041 = vst [vmem:[#allocation2 + $0x118] sm:$0xff] %v793
    %1042 = vst [vmem:[#allocation2 + $0x120] sm:$0xff] %v794
    %1043 = vst [vmem:[#allocation2 + $0x128] sm:$0xff] %v795
    %1044 = vst [vmem:[#allocation2 + $0x130] sm:$0xff] %v796
    %1045 = vst [vmem:[#allocation2 + $0x138] sm:$0xff] %v797
    %1046 = vrot.lane.b32.xlu0 %v790, 127
    %v1047 = vpop.permute.xlu0 %1046
    %1048 = vrot.lane.b32.xlu0 %v791, 127
    %v1049 = vpop.permute.xlu0 %1048
    %1050 = vrot.lane.b32.xlu0 %v792, 127
    %v1051 = vpop.permute.xlu0 %1050
    %1052 = vrot.lane.b32.xlu0 %v793, 127
    %v1053 = vpop.permute.xlu0 %1052
    %1054 = vrot.lane.b32.xlu0 %v794, 127
    %v1055 = vpop.permute.xlu0 %1054
    %1056 = vrot.lane.b32.xlu0 %v795, 127
    %v1057 = vpop.permute.xlu0 %1056
    %1058 = vrot.lane.b32.xlu0 %v796, 127
    %v1059 = vpop.permute.xlu0 %1058
    %1060 = vrot.lane.b32.xlu0 %v797, 127
    %v1061 = vpop.permute.xlu0 %1060
    %v1062 = vsel %vm313, %v1059, %v1061
    %v1063 = vsel %vm313, %v1057, %v1059
    %v1064 = vsel %vm313, %v1055, %v1057
    %v1065 = vsel %vm313, %v1053, %v1055
    %v1066 = vsel %vm313, %v1051, %v1053
    %v1067 = vsel %vm313, %v1049, %v1051
    %v1068 = vsel %vm313, %v1047, %v1049
    %v1069 = vsel %vm313, %v1061, %v1047
    %v1070 = vld [vmem:[%s322] ss:$8 sm:$0xf]
    %v1071 = vld [vmem:[%s322] ss:$8 sm:$0xf0]
    %v1072 = vor.u32 %v1070, %v1071
    %v1074 = vperm.slane %v1072, 0
    %v1075 = vperm.slane %v1072, 1
    %v1076 = vperm.slane %v1072, 2
    %v1077 = vperm.slane %v1072, 3
    %v1078 = vperm.slane %v1072, 4
    %v1079 = vperm.slane %v1072, 5
    %v1080 = vperm.slane %v1072, 6
    %v1081 = vperm.slane %v1072, 7
    %v1090 = vmul.f32 %v1068, %v1074
    %v1091 = vmul.f32 %v1067, %v1075
    %v1092 = vmul.f32 %v1066, %v1076
    %v1093 = vmul.f32 %v1065, %v1077
    %v1094 = vmul.f32 %v1064, %v1078
    %v1095 = vmul.f32 %v1063, %v1079
    %v1096 = vmul.f32 %v1062, %v1080
    %v1097 = vmul.f32 %v1069, %v1081
    %1098 = vst [vmem:[#allocation2 + $0x140] sm:$0xff] %v1090
    %1099 = vst [vmem:[#allocation2 + $0x148] sm:$0xff] %v1091
    %1100 = vst [vmem:[#allocation2 + $0x150] sm:$0xff] %v1092
    %1101 = vst [vmem:[#allocation2 + $0x158] sm:$0xff] %v1093
    %1102 = vst [vmem:[#allocation2 + $0x160] sm:$0xff] %v1094
    %1103 = vst [vmem:[#allocation2 + $0x168] sm:$0xff] %v1095
    %1104 = vst [vmem:[#allocation2 + $0x170] sm:$0xff] %v1096
    %1105 = vst [vmem:[#allocation2 + $0x178] sm:$0xff] %v1097
    %1106 = vrot.lane.b32.xlu0 %v790, 113
    %v1107 = vpop.permute.xlu0 %1106
    %1108 = vrot.lane.b32.xlu0 %v791, 113
    %v1109 = vpop.permute.xlu0 %1108
    %1110 = vrot.lane.b32.xlu0 %v792, 113
    %v1111 = vpop.permute.xlu0 %1110
    %1112 = vrot.lane.b32.xlu0 %v793, 113
    %v1113 = vpop.permute.xlu0 %1112
    %1114 = vrot.lane.b32.xlu0 %v794, 113
    %v1115 = vpop.permute.xlu0 %1114
    %1116 = vrot.lane.b32.xlu0 %v795, 113
    %v1117 = vpop.permute.xlu0 %1116
    %1118 = vrot.lane.b32.xlu0 %v796, 113
    %v1119 = vpop.permute.xlu0 %1118
    %1120 = vrot.lane.b32.xlu0 %v797, 113
    %v1121 = vpop.permute.xlu0 %1120
    %v1122 = vsel %vm375, %v1119, %v1121
    %v1123 = vsel %vm375, %v1117, %v1119
    %v1124 = vsel %vm375, %v1115, %v1117
    %v1125 = vsel %vm375, %v1113, %v1115
    %v1126 = vsel %vm375, %v1111, %v1113
    %v1127 = vsel %vm375, %v1109, %v1111
    %v1128 = vsel %vm375, %v1107, %v1109
    %v1129 = vsel %vm375, %v1121, %v1107
    %v1130 = vld [vmem:[%s384] ss:$8 sm:$0xf]
    %v1131 = vld [vmem:[%s384] ss:$8 sm:$0xf0]
    %v1132 = vor.u32 %v1130, %v1131
    %v1134 = vperm.slane %v1132, 0
    %v1135 = vperm.slane %v1132, 1
    %v1136 = vperm.slane %v1132, 2
    %v1137 = vperm.slane %v1132, 3
    %v1138 = vperm.slane %v1132, 4
    %v1139 = vperm.slane %v1132, 5
    %v1140 = vperm.slane %v1132, 6
    %v1141 = vperm.slane %v1132, 7
    %v1150 = vmul.f32 %v1128, %v1134
    %v1151 = vmul.f32 %v1127, %v1135
    %v1152 = vmul.f32 %v1126, %v1136
    %v1153 = vmul.f32 %v1125, %v1137
    %v1154 = vmul.f32 %v1124, %v1138
    %v1155 = vmul.f32 %v1123, %v1139
    %v1156 = vmul.f32 %v1122, %v1140
    %v1157 = vmul.f32 %v1129, %v1141
    %1158 = vst [vmem:[#allocation2 + $0x180] sm:$0xff] %v1150
    %1159 = vst [vmem:[#allocation2 + $0x188] sm:$0xff] %v1151
    %1160 = vst [vmem:[#allocation2 + $0x190] sm:$0xff] %v1152
    %1161 = vst [vmem:[#allocation2 + $0x198] sm:$0xff] %v1153
    %1162 = vst [vmem:[#allocation2 + $0x1a0] sm:$0xff] %v1154
    %1163 = vst [vmem:[#allocation2 + $0x1a8] sm:$0xff] %v1155
    %1164 = vst [vmem:[#allocation2 + $0x1b0] sm:$0xff] %v1156
    %1165 = vst [vmem:[#allocation2 + $0x1b8] sm:$0xff] %v1157
    %1166 = vrot.lane.b32.xlu0 %v790, 112
    %v1167 = vpop.permute.xlu0 %1166
    %1168 = vrot.lane.b32.xlu0 %v791, 112
    %v1169 = vpop.permute.xlu0 %1168
    %1170 = vrot.lane.b32.xlu0 %v792, 112
    %v1171 = vpop.permute.xlu0 %1170
    %1172 = vrot.lane.b32.xlu0 %v793, 112
    %v1173 = vpop.permute.xlu0 %1172
    %1174 = vrot.lane.b32.xlu0 %v794, 112
    %v1175 = vpop.permute.xlu0 %1174
    %1176 = vrot.lane.b32.xlu0 %v795, 112
    %v1177 = vpop.permute.xlu0 %1176
    %1178 = vrot.lane.b32.xlu0 %v796, 112
    %v1179 = vpop.permute.xlu0 %1178
    %1180 = vrot.lane.b32.xlu0 %v797, 112
    %v1181 = vpop.permute.xlu0 %1180
    %v1182 = vsel %vm437, %v1179, %v1181
    %v1183 = vsel %vm437, %v1177, %v1179
    %v1184 = vsel %vm437, %v1175, %v1177
    %v1185 = vsel %vm437, %v1173, %v1175
    %v1186 = vsel %vm437, %v1171, %v1173
    %v1187 = vsel %vm437, %v1169, %v1171
    %v1188 = vsel %vm437, %v1167, %v1169
    %v1189 = vsel %vm437, %v1181, %v1167
    %v1190 = vld [vmem:[%s446] ss:$8 sm:$0xf]
    %v1191 = vld [vmem:[%s446] ss:$8 sm:$0xf0]
    %v1192 = vor.u32 %v1190, %v1191
    %v1194 = vperm.slane %v1192, 0
    %v1195 = vperm.slane %v1192, 1
    %v1196 = vperm.slane %v1192, 2
    %v1197 = vperm.slane %v1192, 3
    %v1198 = vperm.slane %v1192, 4
    %v1199 = vperm.slane %v1192, 5
    %v1200 = vperm.slane %v1192, 6
    %v1201 = vperm.slane %v1192, 7
    %v1210 = vmul.f32 %v1188, %v1194
    %v1211 = vmul.f32 %v1187, %v1195
    %v1212 = vmul.f32 %v1186, %v1196
    %v1213 = vmul.f32 %v1185, %v1197
    %v1214 = vmul.f32 %v1184, %v1198
    %v1215 = vmul.f32 %v1183, %v1199
    %v1216 = vmul.f32 %v1182, %v1200
    %v1217 = vmul.f32 %v1189, %v1201
    %1218 = vst [vmem:[#allocation2 + $0x1c0] sm:$0xff] %v1210
    %1219 = vst [vmem:[#allocation2 + $0x1c8] sm:$0xff] %v1211
    %1220 = vst [vmem:[#allocation2 + $0x1d0] sm:$0xff] %v1212
    %1221 = vst [vmem:[#allocation2 + $0x1d8] sm:$0xff] %v1213
    %1222 = vst [vmem:[#allocation2 + $0x1e0] sm:$0xff] %v1214
    %1223 = vst [vmem:[#allocation2 + $0x1e8] sm:$0xff] %v1215
    %1224 = vst [vmem:[#allocation2 + $0x1f0] sm:$0xff] %v1216
    %1225 = vst [vmem:[#allocation2 + $0x1f8] sm:$0xff] %v1217
    %1226 = vrot.lane.b32.xlu0 %v790, 111
    %v1227 = vpop.permute.xlu0 %1226
    %1228 = vrot.lane.b32.xlu0 %v791, 111
    %v1229 = vpop.permute.xlu0 %1228
    %1230 = vrot.lane.b32.xlu0 %v792, 111
    %v1231 = vpop.permute.xlu0 %1230
    %1232 = vrot.lane.b32.xlu0 %v793, 111
    %v1233 = vpop.permute.xlu0 %1232
    %1234 = vrot.lane.b32.xlu0 %v794, 111
    %v1235 = vpop.permute.xlu0 %1234
    %1236 = vrot.lane.b32.xlu0 %v795, 111
    %v1237 = vpop.permute.xlu0 %1236
    %1238 = vrot.lane.b32.xlu0 %v796, 111
    %v1239 = vpop.permute.xlu0 %1238
    %1240 = vrot.lane.b32.xlu0 %v797, 111
    %v1241 = vpop.permute.xlu0 %1240
    %v1242 = vsel %vm499, %v1239, %v1241
    %v1243 = vsel %vm499, %v1237, %v1239
    %v1244 = vsel %vm499, %v1235, %v1237
    %v1245 = vsel %vm499, %v1233, %v1235
    %v1246 = vsel %vm499, %v1231, %v1233
    %v1247 = vsel %vm499, %v1229, %v1231
    %v1248 = vsel %vm499, %v1227, %v1229
    %v1249 = vsel %vm499, %v1241, %v1227
    %v1250 = vld [vmem:[%s508] ss:$8 sm:$0xf]
    %v1251 = vld [vmem:[%s508] ss:$8 sm:$0xf0]
    %v1252 = vor.u32 %v1250, %v1251
    %v1254 = vperm.slane %v1252, 0
    %v1255 = vperm.slane %v1252, 1
    %v1256 = vperm.slane %v1252, 2
    %v1257 = vperm.slane %v1252, 3
    %v1258 = vperm.slane %v1252, 4
    %v1259 = vperm.slane %v1252, 5
    %v1260 = vperm.slane %v1252, 6
    %v1261 = vperm.slane %v1252, 7
    %v1270 = vmul.f32 %v1248, %v1254
    %v1271 = vmul.f32 %v1247, %v1255
    %v1272 = vmul.f32 %v1246, %v1256
    %v1273 = vmul.f32 %v1245, %v1257
    %v1274 = vmul.f32 %v1244, %v1258
    %v1275 = vmul.f32 %v1243, %v1259
    %v1276 = vmul.f32 %v1242, %v1260
    %v1277 = vmul.f32 %v1249, %v1261
    %1278 = vst [vmem:[#allocation2 + $0x200] sm:$0xff] %v1270
    %1279 = vst [vmem:[#allocation2 + $0x208] sm:$0xff] %v1271
    %1280 = vst [vmem:[#allocation2 + $0x210] sm:$0xff] %v1272
    %1281 = vst [vmem:[#allocation2 + $0x218] sm:$0xff] %v1273
    %1282 = vst [vmem:[#allocation2 + $0x220] sm:$0xff] %v1274
    %1283 = vst [vmem:[#allocation2 + $0x228] sm:$0xff] %v1275
    %1284 = vst [vmem:[#allocation2 + $0x230] sm:$0xff] %v1276
    %1285 = vst [vmem:[#allocation2 + $0x238] sm:$0xff] %v1277
    %s1286 = scalar_lea.vmem %s2, 8
    %v1287 = vld [vmem:[%s1286] sm:$0xff]
    %v1288 = vld [vmem:[#allocation2] sm:$0xff]
    %v1289 = vld [vmem:[#allocation2 + $0x8] sm:$0xff]
    %v1290 = vld [vmem:[#allocation2 + $0x10] sm:$0xff]
    %v1291 = vld [vmem:[#allocation2 + $0x18] sm:$0xff]
    %v1292 = vld [vmem:[#allocation2 + $0x20] sm:$0xff]
    %v1293 = vld [vmem:[#allocation2 + $0x28] sm:$0xff]
    %v1294 = vld [vmem:[#allocation2 + $0x30] sm:$0xff]
    %v1295 = vld [vmem:[#allocation2 + $0x38] sm:$0xff]
    %v1296 = vld [vmem:[#allocation2 + $0x40] sm:$0xff]
    %v1297 = vld [vmem:[#allocation2 + $0x48] sm:$0xff]
    %v1298 = vld [vmem:[#allocation2 + $0x50] sm:$0xff]
    %v1299 = vld [vmem:[#allocation2 + $0x58] sm:$0xff]
    %v1300 = vld [vmem:[#allocation2 + $0x60] sm:$0xff]
    %v1301 = vld [vmem:[#allocation2 + $0x68] sm:$0xff]
    %v1302 = vld [vmem:[#allocation2 + $0x70] sm:$0xff]
    %v1303 = vld [vmem:[#allocation2 + $0x78] sm:$0xff]
    %v1304 = vld [vmem:[#allocation2 + $0x80] sm:$0xff]
    %v1305 = vld [vmem:[#allocation2 + $0x88] sm:$0xff]
    %v1306 = vld [vmem:[#allocation2 + $0x90] sm:$0xff]
    %v1307 = vld [vmem:[#allocation2 + $0x98] sm:$0xff]
    %v1308 = vld [vmem:[#allocation2 + $0xa0] sm:$0xff]
    %v1309 = vld [vmem:[#allocation2 + $0xa8] sm:$0xff]
    %v1310 = vld [vmem:[#allocation2 + $0xb0] sm:$0xff]
    %v1311 = vld [vmem:[#allocation2 + $0xb8] sm:$0xff]
    %v1312 = vld [vmem:[#allocation2 + $0xc0] sm:$0xff]
    %v1313 = vld [vmem:[#allocation2 + $0xc8] sm:$0xff]
    %v1314 = vld [vmem:[#allocation2 + $0xd0] sm:$0xff]
    %v1315 = vld [vmem:[#allocation2 + $0xd8] sm:$0xff]
    %v1316 = vld [vmem:[#allocation2 + $0xe0] sm:$0xff]
    %v1317 = vld [vmem:[#allocation2 + $0xe8] sm:$0xff]
    %v1318 = vld [vmem:[#allocation2 + $0xf0] sm:$0xff]
    %v1319 = vld [vmem:[#allocation2 + $0xf8] sm:$0xff]
    %v1320 = vld [vmem:[#allocation2 + $0x100] sm:$0xff]
    %v1321 = vld [vmem:[#allocation2 + $0x108] sm:$0xff]
    %v1322 = vld [vmem:[#allocation2 + $0x110] sm:$0xff]
    %v1323 = vld [vmem:[#allocation2 + $0x118] sm:$0xff]
    %v1324 = vld [vmem:[#allocation2 + $0x120] sm:$0xff]
    %v1325 = vld [vmem:[#allocation2 + $0x128] sm:$0xff]
    %v1326 = vld [vmem:[#allocation2 + $0x130] sm:$0xff]
    %v1327 = vld [vmem:[#allocation2 + $0x138] sm:$0xff]
    %v1328 = vld [vmem:[#allocation2 + $0x140] sm:$0xff]
    %v1329 = vld [vmem:[#allocation2 + $0x148] sm:$0xff]
    %v1330 = vld [vmem:[#allocation2 + $0x150] sm:$0xff]
    %v1331 = vld [vmem:[#allocation2 + $0x158] sm:$0xff]
    %v1332 = vld [vmem:[#allocation2 + $0x160] sm:$0xff]
    %v1333 = vld [vmem:[#allocation2 + $0x168] sm:$0xff]
    %v1334 = vld [vmem:[#allocation2 + $0x170] sm:$0xff]
    %v1335 = vld [vmem:[#allocation2 + $0x178] sm:$0xff]
    %v1336 = vld [vmem:[#allocation2 + $0x180] sm:$0xff]
    %v1337 = vld [vmem:[#allocation2 + $0x188] sm:$0xff]
    %v1338 = vld [vmem:[#allocation2 + $0x190] sm:$0xff]
    %v1339 = vld [vmem:[#allocation2 + $0x198] sm:$0xff]
    %v1340 = vld [vmem:[#allocation2 + $0x1a0] sm:$0xff]
    %v1341 = vld [vmem:[#allocation2 + $0x1a8] sm:$0xff]
    %v1342 = vld [vmem:[#allocation2 + $0x1b0] sm:$0xff]
    %v1343 = vld [vmem:[#allocation2 + $0x1b8] sm:$0xff]
    %v1344 = vld [vmem:[#allocation2 + $0x1c0] sm:$0xff]
    %v1345 = vld [vmem:[#allocation2 + $0x1c8] sm:$0xff]
    %v1346 = vld [vmem:[#allocation2 + $0x1d0] sm:$0xff]
    %v1347 = vld [vmem:[#allocation2 + $0x1d8] sm:$0xff]
    %v1348 = vld [vmem:[#allocation2 + $0x1e0] sm:$0xff]
    %v1349 = vld [vmem:[#allocation2 + $0x1e8] sm:$0xff]
    %v1350 = vld [vmem:[#allocation2 + $0x1f0] sm:$0xff]
    %v1351 = vld [vmem:[#allocation2 + $0x1f8] sm:$0xff]
    %v1352 = vld [vmem:[#allocation2 + $0x200] sm:$0xff]
    %v1353 = vld [vmem:[#allocation2 + $0x208] sm:$0xff]
    %v1354 = vld [vmem:[#allocation2 + $0x210] sm:$0xff]
    %v1355 = vld [vmem:[#allocation2 + $0x218] sm:$0xff]
    %v1356 = vld [vmem:[#allocation2 + $0x220] sm:$0xff]
    %v1357 = vld [vmem:[#allocation2 + $0x228] sm:$0xff]
    %v1358 = vld [vmem:[#allocation2 + $0x230] sm:$0xff]
    %v1359 = vld [vmem:[#allocation2 + $0x238] sm:$0xff]
    %v1360 = vld [vmem:[#allocation2 + $0x240] sm:$0xff]
    %v1361 = vld [vmem:[#allocation2 + $0x248] sm:$0xff]
    %v1362 = vld [vmem:[#allocation2 + $0x250] sm:$0xff]
    %v1363 = vld [vmem:[#allocation2 + $0x258] sm:$0xff]
    %v1364 = vld [vmem:[#allocation2 + $0x260] sm:$0xff]
    %v1365 = vld [vmem:[#allocation2 + $0x268] sm:$0xff]
    %v1366 = vld [vmem:[#allocation2 + $0x270] sm:$0xff]
    %v1367 = vld [vmem:[#allocation2 + $0x278] sm:$0xff]
    %v1369 = vsel %vm626, %v1287, 0
    %1371 = vmatpush.msra.mxu0 0.0
    %1372 = vmatpush.msra.mxu0 0.0
    %1373 = vmatpush.msra.mxu0 0.0
    %1374 = vmatpush.msra.mxu0 0.0
    %1375 = vmatpush.msra.mxu0 0.0
    %1376 = vmatpush.msra.mxu0 0.0
    %1377 = vmatpush.msra.mxu0 %v1360
    %1378 = vmatpush.msra.mxu0 %v1352
    %1379 = vmatpush.msra.mxu0 %v1344
    %1380 = vmatpush.msra.mxu0 %v1336
    %1381 = vmatpush.msra.mxu0 %v1328
    %1382 = vmatpush.msra.mxu0 %v1320
    %1383 = vmatpush.msra.mxu0 %v1312
    %1384 = vmatpush.msra.mxu0 %v1304
    %1385 = vmatpush.msra.mxu0 %v1296
    %1386 = vmatpush.msra.mxu0 %v1288
    %1387 = vmatmul.f32.gmra.mxu0 %v1369
    %v1388 = vpop.f32.mrf.mxu0
    %v1389 = vadd.f32 0.0, %v1388
    %1390 = vdwg.mxu0
    %1391 = vmatpush.msra.mxu0 0.0
    %1392 = vmatpush.msra.mxu0 0.0
    %1393 = vmatpush.msra.mxu0 0.0
    %1394 = vmatpush.msra.mxu0 0.0
    %1395 = vmatpush.msra.mxu0 0.0
    %1396 = vmatpush.msra.mxu0 0.0
    %1397 = vmatpush.msra.mxu0 %v1361
    %1398 = vmatpush.msra.mxu0 %v1353
    %1399 = vmatpush.msra.mxu0 %v1345
    %1400 = vmatpush.msra.mxu0 %v1337
    %1401 = vmatpush.msra.mxu0 %v1329
    %1402 = vmatpush.msra.mxu0 %v1321
    %1403 = vmatpush.msra.mxu0 %v1313
    %1404 = vmatpush.msra.mxu0 %v1305
    %1405 = vmatpush.msra.mxu0 %v1297
    %1406 = vmatpush.msra.mxu0 %v1289
    %1407 = vmatmul.f32.gmra.mxu0 %v1369
    %v1408 = vpop.f32.mrf.mxu0
    %v1409 = vadd.f32 0.0, %v1408
    %1410 = vdwg.mxu0
    %1411 = vmatpush.msra.mxu0 0.0
    %1412 = vmatpush.msra.mxu0 0.0
    %1413 = vmatpush.msra.mxu0 0.0
    %1414 = vmatpush.msra.mxu0 0.0
    %1415 = vmatpush.msra.mxu0 0.0
    %1416 = vmatpush.msra.mxu0 0.0
    %1417 = vmatpush.msra.mxu0 %v1362
    %1418 = vmatpush.msra.mxu0 %v1354
    %1419 = vmatpush.msra.mxu0 %v1346
    %1420 = vmatpush.msra.mxu0 %v1338
    %1421 = vmatpush.msra.mxu0 %v1330
    %1422 = vmatpush.msra.mxu0 %v1322
    %1423 = vmatpush.msra.mxu0 %v1314
    %1424 = vmatpush.msra.mxu0 %v1306
    %1425 = vmatpush.msra.mxu0 %v1298
    %1426 = vmatpush.msra.mxu0 %v1290
    %1427 = vmatmul.f32.gmra.mxu0 %v1369
    %v1428 = vpop.f32.mrf.mxu0
    %v1429 = vadd.f32 0.0, %v1428
    %1430 = vdwg.mxu0
    %1431 = vmatpush.msra.mxu0 0.0
    %1432 = vmatpush.msra.mxu0 0.0
    %1433 = vmatpush.msra.mxu0 0.0
    %1434 = vmatpush.msra.mxu0 0.0
    %1435 = vmatpush.msra.mxu0 0.0
    %1436 = vmatpush.msra.mxu0 0.0
    %1437 = vmatpush.msra.mxu0 %v1363
    %1438 = vmatpush.msra.mxu0 %v1355
    %1439 = vmatpush.msra.mxu0 %v1347
    %1440 = vmatpush.msra.mxu0 %v1339
    %1441 = vmatpush.msra.mxu0 %v1331
    %1442 = vmatpush.msra.mxu0 %v1323
    %1443 = vmatpush.msra.mxu0 %v1315
    %1444 = vmatpush.msra.mxu0 %v1307
    %1445 = vmatpush.msra.mxu0 %v1299
    %1446 = vmatpush.msra.mxu0 %v1291
    %1447 = vmatmul.f32.gmra.mxu0 %v1369
    %v1448 = vpop.f32.mrf.mxu0
    %v1449 = vadd.f32 0.0, %v1448
    %1450 = vdwg.mxu0
    %1451 = vmatpush.msra.mxu0 0.0
    %1452 = vmatpush.msra.mxu0 0.0
    %1453 = vmatpush.msra.mxu0 0.0
    %1454 = vmatpush.msra.mxu0 0.0
    %1455 = vmatpush.msra.mxu0 0.0
    %1456 = vmatpush.msra.mxu0 0.0
    %1457 = vmatpush.msra.mxu0 %v1364
    %1458 = vmatpush.msra.mxu0 %v1356
    %1459 = vmatpush.msra.mxu0 %v1348
    %1460 = vmatpush.msra.mxu0 %v1340
    %1461 = vmatpush.msra.mxu0 %v1332
    %1462 = vmatpush.msra.mxu0 %v1324
    %1463 = vmatpush.msra.mxu0 %v1316
    %1464 = vmatpush.msra.mxu0 %v1308
    %1465 = vmatpush.msra.mxu0 %v1300
    %1466 = vmatpush.msra.mxu0 %v1292
    %1467 = vmatmul.f32.gmra.mxu0 %v1369
    %v1468 = vpop.f32.mrf.mxu0
    %v1469 = vadd.f32 0.0, %v1468
    %1470 = vdwg.mxu0
    %1471 = vmatpush.msra.mxu0 0.0
    %1472 = vmatpush.msra.mxu0 0.0
    %1473 = vmatpush.msra.mxu0 0.0
    %1474 = vmatpush.msra.mxu0 0.0
    %1475 = vmatpush.msra.mxu0 0.0
    %1476 = vmatpush.msra.mxu0 0.0
    %1477 = vmatpush.msra.mxu0 %v1365
    %1478 = vmatpush.msra.mxu0 %v1357
    %1479 = vmatpush.msra.mxu0 %v1349
    %1480 = vmatpush.msra.mxu0 %v1341
    %1481 = vmatpush.msra.mxu0 %v1333
    %1482 = vmatpush.msra.mxu0 %v1325
    %1483 = vmatpush.msra.mxu0 %v1317
    %1484 = vmatpush.msra.mxu0 %v1309
    %1485 = vmatpush.msra.mxu0 %v1301
    %1486 = vmatpush.msra.mxu0 %v1293
    %1487 = vmatmul.f32.gmra.mxu0 %v1369
    %v1488 = vpop.f32.mrf.mxu0
    %v1489 = vadd.f32 0.0, %v1488
    %1490 = vdwg.mxu0
    %1491 = vmatpush.msra.mxu0 0.0
    %1492 = vmatpush.msra.mxu0 0.0
    %1493 = vmatpush.msra.mxu0 0.0
    %1494 = vmatpush.msra.mxu0 0.0
    %1495 = vmatpush.msra.mxu0 0.0
    %1496 = vmatpush.msra.mxu0 0.0
    %1497 = vmatpush.msra.mxu0 %v1366
    %1498 = vmatpush.msra.mxu0 %v1358
    %1499 = vmatpush.msra.mxu0 %v1350
    %1500 = vmatpush.msra.mxu0 %v1342
    %1501 = vmatpush.msra.mxu0 %v1334
    %1502 = vmatpush.msra.mxu0 %v1326
    %1503 = vmatpush.msra.mxu0 %v1318
    %1504 = vmatpush.msra.mxu0 %v1310
    %1505 = vmatpush.msra.mxu0 %v1302
    %1506 = vmatpush.msra.mxu0 %v1294
    %1507 = vmatmul.f32.gmra.mxu0 %v1369
    %v1508 = vpop.f32.mrf.mxu0
    %v1509 = vadd.f32 0.0, %v1508
    %1510 = vdwg.mxu0
    %1511 = vmatpush.msra.mxu0 0.0
    %1512 = vmatpush.msra.mxu0 0.0
    %1513 = vmatpush.msra.mxu0 0.0
    %1514 = vmatpush.msra.mxu0 0.0
    %1515 = vmatpush.msra.mxu0 0.0
    %1516 = vmatpush.msra.mxu0 0.0
    %1517 = vmatpush.msra.mxu0 %v1367
    %1518 = vmatpush.msra.mxu0 %v1359
    %1519 = vmatpush.msra.mxu0 %v1351
    %1520 = vmatpush.msra.mxu0 %v1343
    %1521 = vmatpush.msra.mxu0 %v1335
    %1522 = vmatpush.msra.mxu0 %v1327
    %1523 = vmatpush.msra.mxu0 %v1319
    %1524 = vmatpush.msra.mxu0 %v1311
    %1525 = vmatpush.msra.mxu0 %v1303
    %1526 = vmatpush.msra.mxu0 %v1295
    %1527 = vmatmul.f32.gmra.mxu0 %v1369
    %v1528 = vpop.f32.mrf.mxu0
    %v1529 = vadd.f32 0.0, %v1528
    %1530 = vdwg.mxu0
    %v1531 = vmax.f32 %v1389, 0.0
    %v1532 = vmax.f32 %v1409, 0.0
    %v1533 = vmax.f32 %v1429, 0.0
    %v1534 = vmax.f32 %v1449, 0.0
    %v1535 = vmax.f32 %v1469, 0.0
    %v1536 = vmax.f32 %v1489, 0.0
    %v1537 = vmax.f32 %v1509, 0.0
    %v1538 = vmax.f32 %v1529, 0.0
    %v1539 = vld [vmem:[%s446] ss:$8 sm:$0xf]
    %v1540 = vld [vmem:[%s322] ss:$8 sm:$0xf]
    %s1541 = scalar_lea.vmem %s1, 65
    %v1542 = vld [vmem:[%s1541] ss:$8 sm:$0xf]
    %v1543 = vsub.f32 %v23, %v19
    %v1544 = vsub.f32 %v24, %v20
    %v1545 = vsub.f32 %v25, %v21
    %v1546 = vsub.f32 %v26, %v22
    %v1547 = vsel %vm437, %v428, %v422
    %v1548 = vsub.f32 %v444, %v19
    %v1549 = vsub.f32 %v443, %v20
    %v1550 = vsub.f32 %v442, %v21
    %v1551 = vsub.f32 %v1547, %v22
    %v1553 = vperm.slane %v1539, 0
    %v1554 = vperm.slane %v1539, 1
    %v1555 = vperm.slane %v1539, 2
    %v1556 = vperm.slane %v1539, 3
    %v1561 = vmul.f32 %v1548, %v1553
    %v1562 = vmul.f32 %v1549, %v1554
    %v1563 = vmul.f32 %v1550, %v1555
    %v1564 = vmul.f32 %v1551, %v1556
    %v1565 = vsel %vm313, %v304, %v298
    %v1566 = vsub.f32 %v320, %v19
    %v1567 = vsub.f32 %v319, %v20
    %v1568 = vsub.f32 %v318, %v21
    %v1569 = vsub.f32 %v1565, %v22
    %v1571 = vperm.slane %v1540, 0
    %v1572 = vperm.slane %v1540, 1
    %v1573 = vperm.slane %v1540, 2
    %v1574 = vperm.slane %v1540, 3
    %v1579 = vmul.f32 %v1566, %v1571
    %v1580 = vmul.f32 %v1567, %v1572
    %v1581 = vmul.f32 %v1568, %v1573
    %v1582 = vmul.f32 %v1569, %v1574
    %v1584 = vperm.slane %v1542, 0
    %v1585 = vperm.slane %v1542, 1
    %v1586 = vperm.slane %v1542, 2
    %v1587 = vperm.slane %v1542, 3
    %v1592 = vmul.f32 %v1543, %v1584
    %v1593 = vmul.f32 %v1544, %v1585
    %v1594 = vmul.f32 %v1545, %v1586
    %v1595 = vmul.f32 %v1546, %v1587
    %v1596 = vsub.f32 %v1531, %v1535
    %v1597 = vsub.f32 %v1532, %v1536
    %v1598 = vsub.f32 %v1533, %v1537
    %v1599 = vsub.f32 %v1534, %v1538
    %v1600 = vmul.f32 %v1543, %v1543
    %v1601 = vmul.f32 %v1544, %v1544
    %v1602 = vmul.f32 %v1545, %v1545
    %v1603 = vmul.f32 %v1546, %v1546
    %v1604 = vmul.f32 %v1600, 0.0006510417
    %v1605 = vmul.f32 %v1601, 0.0006510417
    %v1606 = vmul.f32 %v1602, 0.0006510417
    %v1607 = vmul.f32 %v1603, 0.0006510417
    %v1608 = vmul.f32 %v1561, %v1561
    %v1609 = vmul.f32 %v1562, %v1562
    %v1610 = vmul.f32 %v1563, %v1563
    %v1611 = vmul.f32 %v1564, %v1564
    %v1612 = vmul.f32 %v1579, %v1579
    %v1613 = vmul.f32 %v1580, %v1580
    %v1614 = vmul.f32 %v1581, %v1581
    %v1615 = vmul.f32 %v1582, %v1582
    %v1616 = vadd.f32 %v1608, %v1612
    %v1617 = vadd.f32 %v1609, %v1613
    %v1618 = vadd.f32 %v1610, %v1614
    %v1619 = vadd.f32 %v1611, %v1615
    %v1620 = vmul.f32 %v1616, 1e-06
    %v1621 = vmul.f32 %v1617, 1e-06
    %v1622 = vmul.f32 %v1618, 1e-06
    %v1623 = vmul.f32 %v1619, 1e-06
    %v1624 = vadd.f32 %v1604, %v1620
    %v1625 = vadd.f32 %v1605, %v1621
    %v1626 = vadd.f32 %v1606, %v1622
    %v1627 = vadd.f32 %v1607, %v1623
    %v1628 = vmul.f32 %v1592, %v1592
    %v1629 = vmul.f32 %v1593, %v1593
    %v1630 = vmul.f32 %v1594, %v1594
    %v1631 = vmul.f32 %v1595, %v1595
    %v1632 = vmul.f32 %v1628, 3.2552085e-05
    %v1633 = vmul.f32 %v1629, 3.2552085e-05
    %v1634 = vmul.f32 %v1630, 3.2552085e-05
    %v1635 = vmul.f32 %v1631, 3.2552085e-05
    %v1636 = vadd.f32 %v1624, %v1632
    %v1637 = vadd.f32 %v1625, %v1633
    %v1638 = vadd.f32 %v1626, %v1634
    %v1639 = vadd.f32 %v1627, %v1635
    %v1640 = vmul.f32 %v1596, %v1596
    %v1641 = vmul.f32 %v1597, %v1597
    %v1642 = vmul.f32 %v1598, %v1598
    %v1643 = vmul.f32 %v1599, %v1599
    %v1644 = vmul.f32 %v1640, 2.4414064e-07
    %v1645 = vmul.f32 %v1641, 2.4414064e-07
    %v1646 = vmul.f32 %v1642, 2.4414064e-07
    %v1647 = vmul.f32 %v1643, 2.4414064e-07
    %v1648 = vadd.f32 %v1636, %v1644
    %v1649 = vadd.f32 %v1637, %v1645
    %v1650 = vadd.f32 %v1638, %v1646
    %v1651 = vadd.f32 %v1639, %v1647
    %s1652 = sld [smem:[#allocation3]]
    %v1653 = vadd.f32 %v1648, %v1649
    %v1654 = vadd.f32 %v1653, %v1650
    %v1655 = vadd.f32 %v1654, %v1651
    %1656 = vadd.xlane.f32.xlu0 %v1655
    %v1657 = vpop.xlane.xlu0 %1656
    %v1658 = vrot.slane %v1657, 4
    %v1659 = vadd.f32 %v1657, %v1658
    %v1660 = vrot.slane %v1659, 2
    %v1661 = vadd.f32 %v1659, %v1660
    %v1662 = vrot.slane %v1661, 1
    %v1663 = vadd.f32 %v1661, %v1662
    %s1664 = vtos %v1663
    %s1665 = sadd.f32 %s1652, %s1664
    %s1666 = scalar_lea.smem [#allocation4], 0
    %1667 = sst [smem:[%s1666]] %s1665
    // Predicated region
    $region18: #{snsrgan_loss.1} parent=1 // pred_check
      _
    $region19: #{snsrgan_loss.1} parent=1 // pred_check_branch
      %1669 = sbr.rel (0) target = $region21
    $region20: #{snsrgan_loss.1} parent=1 // pred_region
      %1671 = vsyncadd [#allocation5], 0
      %s1673 = sshll.u32 %s4, 4
      %s1674 = int_to_ptr.hbm [resolvable:$true] %s1673
      %1676 = dma.smem_to_hbm [#allocation4], 16, %s1674, [#allocation5]
    $region21: #{snsrgan_loss.1} parent=1 // pred_fallthru
      _
    // Predicated region
    $region22: #{snsrgan_loss.1} parent=1 // pred_check
      _
    $region23: #{snsrgan_loss.1} parent=1 // pred_check_branch
      %1678 = sbr.rel (0) target = $region25
    $region24: #{snsrgan_loss.1} parent=1 // pred_region
      %1680 = dma.done [#allocation5], 16
    $region25: #{snsrgan_loss.1} parent=1 // pred_fallthru
      _
    %1681 = sfence
    %1682 = vsyncpa [#allocation5], 1

</llo_original>
